<compile_context>
chip_gen: v6e
topology: v6e:2x2x1
jax: 0.10.0
libtpu: 0.0.40
codegen_flags: <defaults>
</compile_context>

<pallas_src>
import math
import jax
import jax.numpy as jnp
import numpy as np
from jax import lax
from jax.experimental import pallas as pl
from jax.experimental.pallas import tpu as pltpu

# ----------------------- small config (consistent with the module) -----------------------
VOCAB = 100          # vocab_size (small synthetic)
HIDDEN = 32          # hidden
N_HEADS = 8          # attn_heads  (hidden % heads == 0 -> head_dim = 4)
HEAD_DIM = HIDDEN // N_HEADS
FF = 4 * HIDDEN      # feed_forward_hidden
N_LAYERS = 2         # n_layers
SEQ = 8              # sequence length
BATCH = 2
EPS = 1e-6           # LayerNorm eps in the module


# ----------------------------------- Pallas kernel ---------------------------------------
def _layer_norm(t, g, b):
    """Fused one-pass LayerNorm statistics: var = E[t^2] - mu^2 (review item #5)."""
    mu = jnp.mean(t, axis=-1, keepdims=True)
    ms = jnp.mean(t * t, axis=-1, keepdims=True)
    return (t - mu) * lax.rsqrt(ms - mu * mu + EPS) * g + b


def bert_encoder_kernel(x0_ref, bias_ref, blkmask_ref,
                        wqkv_ref, bqkv_ref, wo_ref, bo_ref,
                        g1_ref, be1_ref,
                        w1_ref, bf1_ref, w2_ref, bf2_ref,
                        g2_ref, be2_ref,
                        xo_ref, attn_ref):
    """One full TransformerBlock per grid step; grid axis = layer index ("arbitrary").

    x is carried layer-to-layer in the resident output block xo_ref (constant output
    index_map across the layer axis).  Weight refs are 2-D (layer axis squeezed).
    """
    l = pl.program_id(0)

    # Layer 0: seed the resident activation carry from the embedding output.
    @pl.when(l == 0)
    def _():
        xo_ref[...] = x0_ref[...]

    x = xo_ref[...]                                                  # (B*S, H) f32
    blkmask = blkmask_ref[...]                                       # (NH*S, H) 0/1 head block-diag

    # --- fused Q|K|V projection: one bf16 MXU matmul (f32 accumulate) ---
    # Wq / bq are pre-scaled by 1/sqrt(head_dim) on the host, so no in-kernel scale.
    qkv = jnp.dot(x.astype(jnp.bfloat16), wqkv_ref[...],
                  preferred_element_type=jnp.float32) + bqkv_ref[...]        # (B*S, 3H)

    ctx_rows = []            # per-batch (S, H) context
    p_rows = []              # per-batch (NH*S, S) attention probs
    for b in range(BATCH):                       # static unroll over B=2 batches
        r0 = b * SEQ
        qkv_b = qkv[r0:r0 + SEQ, :]              # (S, 3H), sublane-aligned slice
        q_b = qkv_b[:, :HIDDEN]                  # (S, H)  (already /sqrt(hd))
        k_b = qkv_b[:, HIDDEN:2 * HIDDEN]        # (S, H)
        v_b = qkv_b[:, 2 * HIDDEN:]              # (S, H)
        bias_b = bias_ref[b]                     # (1, S) additive mask bias (hoisted)

        # Block-diagonal Q: replicate q over heads and keep only each head's columns.
        # One (NH*S, H) x (S, H)^T MXU push yields ALL heads' scores for this batch.
        q_rep = jnp.broadcast_to(q_b, (N_HEADS, SEQ, HIDDEN)).reshape(N_HEADS * SEQ, HIDDEN)
        q_bd = q_rep * blkmask                                               # (NH*S, H)
        scores = lax.dot_general(q_bd, k_b, (((1,), (1,)), ((), ())),
                                 preferred_element_type=jnp.float32)         # (NH*S, S)
        scores = scores + bias_b                 # masked keys get -1e10 bias
        m = jnp.max(scores, axis=-1, keepdims=True)
        e = jnp.exp(scores - m)
        # NOTE: approx reciprocal (EUP) is fine while every row has >=1 unmasked key.
        p = e * pl.reciprocal(jnp.sum(e, axis=-1, keepdims=True), approx=True)
        p_rows.append(p)

        # Context for ALL heads in one MXU push; keep head-diagonal columns and fold
        # the head axis with a cheap leading-axis sum (cross-head terms are masked to 0).
        ctx_full = jnp.dot(p, v_b, preferred_element_type=jnp.float32)       # (NH*S, H)
        ctx_b = (ctx_full * blkmask).reshape(N_HEADS, SEQ, HIDDEN).sum(axis=0)   # (S, H)
        ctx_rows.append(ctx_b)

    # Only the final layer's attention is returned -> skip assembly/store on earlier layers.
    @pl.when(l == pl.num_programs(0) - 1)
    def _():
        attn_ref[...] = jnp.stack(p_rows, axis=0).reshape(BATCH, N_HEADS, SEQ, SEQ)

    ctx = jnp.concatenate(ctx_rows, axis=0)                                  # (B*S, H)
    o = jnp.dot(ctx.astype(jnp.bfloat16), wo_ref[...],
                preferred_element_type=jnp.float32) + bo_ref[...]

    # --- residual + LayerNorm (attention sublayer) ---
    y = _layer_norm(x + o, g1_ref[...], be1_ref[...])

    # --- PositionwiseFeedForward with tanh-GELU (element-wise math kept f32) ---
    hdn = jnp.dot(y.astype(jnp.bfloat16), w1_ref[...],
                  preferred_element_type=jnp.float32) + bf1_ref[...]         # (B*S, FF)
    c = jnp.float32(math.sqrt(2.0 / math.pi))
    hdn = 0.5 * hdn * (1.0 + jnp.tanh(c * (hdn + 0.044715 * (hdn * hdn * hdn))))
    ff = jnp.dot(hdn.astype(jnp.bfloat16), w2_ref[...],
                 preferred_element_type=jnp.float32) + bf2_ref[...]

    # --- residual + LayerNorm (FFN sublayer) -> carry for the next layer ---
    xo_ref[...] = _layer_norm(y + ff, g2_ref[...], be2_ref[...])


def bert_encoder(x_flat, bias, blkmask, stacked_params):
    """x_flat: (B*S, H) f32; bias: (B,1,S) additive mask; blkmask: (NH*S, H) 0/1;
    stacked_params: tuple of (L, ...) arrays (dense weights bf16, rest f32)."""
    BS, H = x_flat.shape

    def layer_spec(arr):
        nd = arr.ndim
        # pl.Squeezed() on the layer axis -> kernel receives a 2-D weight ref (review #6).
        return pl.BlockSpec((pl.Squeezed(),) + arr.shape[1:],
                            lambda l, _n=nd: (l,) + (0,) * (_n - 1))

    in_specs = [
        pl.BlockSpec((BS, H), lambda l: (0, 0)),           # x0 (seed for the carry)
        pl.BlockSpec(bias.shape, lambda l: (0, 0, 0)),     # additive mask bias
        pl.BlockSpec(blkmask.shape, lambda l: (0, 0)),     # head block-diagonal mask
    ] + [layer_spec(p) for p in stacked_params]            # per-layer weight slabs

    out_specs = (
        pl.BlockSpec((BS, H), lambda l: (0, 0)),                         # resident x carry
        pl.BlockSpec((BATCH, N_HEADS, SEQ, SEQ), lambda l: (0, 0, 0, 0)),  # last-layer attn
    )
    out_shape = (
        jax.ShapeDtypeStruct((BS, H), jnp.float32),
        jax.ShapeDtypeStruct((BATCH, N_HEADS, SEQ, SEQ), jnp.float32),
    )

    # v7x note: at real BERT widths, add a leading "parallel" axis over batch / split M
    # (grid=(2, N_LAYERS)) so the second TensorCore has work, and K-tile w1/w2.
    return pl.pallas_call(
        bert_encoder_kernel,
        out_shape=out_shape,
        grid=(N_LAYERS,),
        in_specs=in_specs,
        out_specs=out_specs,
        compiler_params=pltpu.CompilerParams(
            dimension_semantics=("arbitrary",),      # layer axis carries a dependency
            vmem_limit_bytes=32 * 1024 * 1024,       # explicit budget (safe on v5e/v6e/v7x)
        ),
    )(x_flat, bias, blkmask, *stacked_params)


# ----------------------------------- parameter setup -------------------------------------
def sinusoidal_pe(max_len, hid_dim):
    pos = np.arange(max_len, dtype=np.float32)[:, None]
    div = np.exp(np.arange(0, hid_dim, 2, dtype=np.float32) * (-math.log(10000.0) / hid_dim))
    pe = np.zeros((max_len, hid_dim), dtype=np.float32)
    pe[:, 0::2] = np.sin(pos * div)
    pe[:, 1::2] = np.cos(pos * div)
    return jnp.asarray(pe)


def make_head_block_mask():
    """(NH*S, H) 0/1 mask: row h*S+q keeps only head h's columns h*hd..(h+1)*hd."""
    m = np.zeros((N_HEADS * SEQ, HIDDEN), np.float32)
    for h in range(N_HEADS):
        m[h * SEQ:(h + 1) * SEQ, h * HEAD_DIM:(h + 1) * HEAD_DIM] = 1.0
    return jnp.asarray(m)


def init_bert_params(key):
    kt, ks, kl = jax.random.split(key, 3)
    tok_emb = jax.random.normal(kt, (VOCAB, HIDDEN), jnp.float32) * 0.02
    tok_emb = tok_emb.at[0].set(0.0)                       # padding_idx=0
    seg_emb = jax.random.normal(ks, (3, HIDDEN), jnp.float32) * 0.02
    seg_emb = seg_emb.at[0].set(0.0)                       # padding_idx=0
    pe = sinusoidal_pe(512, HIDDEN)

    layers = []
    for l in range(N_LAYERS):
        keys = jax.random.split(jax.random.fold_in(kl, l), 12)
        w = lambda k, s: jax.random.normal(k, s, jnp.float32) * 0.02
        b = lambda k, s: jax.random.normal(k, s, jnp.float32) * 0.01
        layers.append(dict(
            wq=w(keys[0], (HIDDEN, HIDDEN)), bq=b(keys[1], (1, HIDDEN)),
            wk=w(keys[2], (HIDDEN, HIDDEN)), bk=b(keys[3], (1, HIDDEN)),
            wv=w(keys[4], (HIDDEN, HIDDEN)), bv=b(keys[5], (1, HIDDEN)),
            wo=w(keys[6], (HIDDEN, HIDDEN)), bo=b(keys[7], (1, HIDDEN)),
            g1=jnp.ones((1, HIDDEN), jnp.float32), be1=jnp.zeros((1, HIDDEN), jnp.float32),
            w1=w(keys[8], (HIDDEN, FF)), bf1=b(keys[9], (1, FF)),
            w2=w(keys[10], (FF, HIDDEN)), bf2=b(keys[11], (1, HIDDEN)),
            g2=jnp.ones((1, HIDDEN), jnp.float32), be2=jnp.zeros((1, HIDDEN), jnp.float32),
        ))
    return tok_emb, seg_emb, pe, layers


def stack_layer_params(layers):
    """Fuse QKV (with 1/sqrt(hd) folded into Wq/bq), cast dense weights to bf16, and
    stack every parameter with a leading layer axis."""
    inv_scale = 1.0 / math.sqrt(HEAD_DIM)

    def stk(fn, dtype=jnp.float32):
        return jnp.stack([fn(p) for p in layers], axis=0).astype(dtype)

    bf = jnp.bfloat16
    return (
        stk(lambda p: jnp.concatenate([p["wq"] * inv_scale, p["wk"], p["wv"]], axis=1), bf),
        stk(lambda p: jnp.concatenate([p["bq"] * inv_scale, p["bk"], p["bv"]], axis=1)),
        stk(lambda p: p["wo"], bf), stk(lambda p: p["bo"]),
        stk(lambda p: p["g1"]), stk(lambda p: p["be1"]),
        stk(lambda p: p["w1"], bf), stk(lambda p: p["bf1"]),
        stk(lambda p: p["w2"], bf), stk(lambda p: p["bf2"]),
        stk(lambda p: p["g2"]), stk(lambda p: p["be2"]),
    )


def bert_forward(token_ids, segment_ids, mask, params):
    tok_emb, seg_emb, pe, layers = params
    B, S = token_ids.shape
    # TODO(synk): token/segment embedding gathers + sinusoidal PE stay in plain XLA
    # (parameter/setup glue; no small-scale Pallas gather win at this size).
    x = tok_emb[token_ids] + pe[None, :S, :] + seg_emb[segment_ids]      # (B, S, H)
    # Additive mask bias: 0 for kept keys, -1e10 for masked keys (replaces compare+select).
    bias = ((mask.astype(jnp.float32) - 1.0) * 1e10)[:, None, :]         # (B, 1, S)

    stacked = stack_layer_params(layers)
    blkmask = make_head_block_mask()
    x_flat = x.reshape(B * S, HIDDEN)
    x_out_flat, attn = bert_encoder(x_flat, bias, blkmask, stacked)
    return x_out_flat.reshape(B, S, HIDDEN), attn


# ----------------------------------- pure-JAX reference ----------------------------------
def _ref_block(x, mask, p):
    B, S, H = x.shape
    def heads(t):
        return t.reshape(B, S, N_HEADS, HEAD_DIM).transpose(0, 2, 1, 3)
    q = heads(x @ p["wq"] + p["bq"])
    k = heads(x @ p["wk"] + p["bk"])
    v = heads(x @ p["wv"] + p["bv"])
    scores = jnp.einsum("bhqd,bhkd->bhqk", q, k) / math.sqrt(HEAD_DIM)
    scores = jnp.where(mask[:, None, None, :] == 0, -1e10, scores)
    attn = jax.nn.softmax(scores, axis=-1)
    ctx = jnp.einsum("bhqk,bhkd->bhqd", attn, v).transpose(0, 2, 1, 3).reshape(B, S, H)
    def ln(t, g, b):
        mu = t.mean(-1, keepdims=True)
        var = ((t - mu) ** 2).mean(-1, keepdims=True)
        return (t - mu) / jnp.sqrt(var + EPS) * g + b
    y = ln(x + (ctx @ p["wo"] + p["bo"]), p["g1"], p["be1"])
    h = y @ p["w1"] + p["bf1"]
    h = 0.5 * h * (1 + jnp.tanh(math.sqrt(2 / math.pi) * (h + 0.044715 * h ** 3)))
    z = ln(y + (h @ p["w2"] + p["bf2"]), p["g2"], p["be2"])
    return z, attn


def _ref_forward(token_ids, segment_ids, mask, params):
    tok_emb, seg_emb, pe, layers = params
    B, S = token_ids.shape
    x = tok_emb[token_ids] + pe[None, :S, :] + seg_emb[segment_ids]
    attn = None
    for lp in layers:
        x, attn = _ref_block(x, mask.astype(jnp.float32), lp)
    return x, attn


# ----------------------------------------- main ------------------------------------------
if __name__ == "__main__":
    key = jax.random.PRNGKey(0)
    kp, k1, k2 = jax.random.split(key, 3)

    params = init_bert_params(kp)

    token_ids = jax.random.randint(k1, (BATCH, SEQ), 1, VOCAB)       # (B, S) int32
    segment_ids = jax.random.randint(k2, (BATCH, SEQ), 1, 3)         # (B, S) int32
    mask = jnp.ones((BATCH, SEQ), jnp.float32)
    mask = mask.at[0, SEQ - 1].set(0.0)                              # mask last key of batch 0

    x_out, attn_out = bert_forward(token_ids, segment_ids, mask, params)
    x_out = jax.block_until_ready(x_out)
    attn_out = jax.block_until_ready(attn_out)

    # Sanity check against a pure-f32 reference (kernel uses bf16 matmul operands +
    # an approximate softmax reciprocal -> tolerance loosened accordingly).
    x_exp, attn_exp = _ref_forward(token_ids, segment_ids, mask, params)
    assert x_out.shape == (BATCH, SEQ, HIDDEN)
    assert attn_out.shape == (BATCH, N_HEADS, SEQ, SEQ)
    np.testing.assert_allclose(np.asarray(x_out), np.asarray(x_exp), rtol=1e-2, atol=1e-2)
    np.testing.assert_allclose(np.asarray(attn_out), np.asarray(attn_exp), rtol=1e-2, atol=1e-2)

    print("KERNEL_OK")
</pallas_src>

<mosaic_0001>
module attributes {stable_mosaic.version = 11 : i64} {
  func.func @bert_encoder_kernel(%arg0: i32, %arg1: memref<16x32xf32, #tpu.memory_space<vmem>>, %arg2: memref<2x1x8xf32, #tpu.memory_space<vmem>>, %arg3: memref<64x32xf32, #tpu.memory_space<vmem>>, %arg4: memref<1x32x96xbf16, #tpu.memory_space<vmem>>, %arg5: memref<1x1x96xf32, #tpu.memory_space<vmem>>, %arg6: memref<1x32x32xbf16, #tpu.memory_space<vmem>>, %arg7: memref<1x1x32xf32, #tpu.memory_space<vmem>>, %arg8: memref<1x1x32xf32, #tpu.memory_space<vmem>>, %arg9: memref<1x1x32xf32, #tpu.memory_space<vmem>>, %arg10: memref<1x32x128xbf16, #tpu.memory_space<vmem>>, %arg11: memref<1x1x128xf32, #tpu.memory_space<vmem>>, %arg12: memref<1x128x32xbf16, #tpu.memory_space<vmem>>, %arg13: memref<1x1x32xf32, #tpu.memory_space<vmem>>, %arg14: memref<1x1x32xf32, #tpu.memory_space<vmem>>, %arg15: memref<1x1x32xf32, #tpu.memory_space<vmem>>, %arg16: memref<16x32xf32, #tpu.memory_space<vmem>>, %arg17: memref<2x8x8x8xf32, #tpu.memory_space<vmem>>) attributes {dimension_semantics = [#tpu.dimension_semantics<arbitrary>], iteration_bounds = array<i64: 2>, scalar_prefetch = 0 : i64, scratch_operands = 0 : i64, tpu.core_type = #tpu.core_type<tc>, window_params = [{pipeline_mode = #tpu.pipeline_mode<synchronous>, transform_indices = @transform_0, window_bounds = array<i64: 16, 32>}, {pipeline_mode = #tpu.pipeline_mode<synchronous>, transform_indices = @transform_1, window_bounds = array<i64: 2, 1, 8>}, {pipeline_mode = #tpu.pipeline_mode<synchronous>, transform_indices = @transform_2, window_bounds = array<i64: 64, 32>}, {transform_indices = @transform_3, window_bounds = array<i64: 1, 32, 96>}, {transform_indices = @transform_4, window_bounds = array<i64: 1, 1, 96>}, {transform_indices = @transform_5, window_bounds = array<i64: 1, 32, 32>}, {transform_indices = @transform_6, window_bounds = array<i64: 1, 1, 32>}, {transform_indices = @transform_7, window_bounds = array<i64: 1, 1, 32>}, {transform_indices = @transform_8, window_bounds = array<i64: 1, 1, 32>}, {transform_indices = @transform_9, window_bounds = array<i64: 1, 32, 128>}, {transform_indices = @transform_10, window_bounds = array<i64: 1, 1, 128>}, {transform_indices = @transform_11, window_bounds = array<i64: 1, 128, 32>}, {transform_indices = @transform_12, window_bounds = array<i64: 1, 1, 32>}, {transform_indices = @transform_13, window_bounds = array<i64: 1, 1, 32>}, {transform_indices = @transform_14, window_bounds = array<i64: 1, 1, 32>}, {pipeline_mode = #tpu.pipeline_mode<synchronous>, transform_indices = @transform_15, window_bounds = array<i64: 16, 32>}, {pipeline_mode = #tpu.pipeline_mode<synchronous>, transform_indices = @transform_16, window_bounds = array<i64: 2, 8, 8, 8>}]} {
    %c0_i32 = arith.constant 0 : i32
    %0 = arith.cmpi eq, %arg0, %c0_i32 : i32
    %1 = arith.extui %0 : i1 to i32
    %c0_i32_0 = arith.constant 0 : i32
    %2 = arith.cmpi ne, %1, %c0_i32_0 : i32
    scf.if %2 {
      %c0_75 = arith.constant 0 : index
      %c0_76 = arith.constant 0 : index
      %163 = vector.load %arg1[%c0_75, %c0_76] : memref<16x32xf32, #tpu.memory_space<vmem>>, vector<16x32xf32>
      %c0_77 = arith.constant 0 : index
      %c0_78 = arith.constant 0 : index
      %164 = vector.load %arg16[%c0_77, %c0_78] : memref<16x32xf32, #tpu.memory_space<vmem>>, vector<16x32xf32>
      tpu.vector_store %arg16[%c0_77, %c0_78], %163 {strides = array<i32>} : memref<16x32xf32, #tpu.memory_space<vmem>>, vector<16x32xf32>,
    } else {
    }
    %c0 = arith.constant 0 : index
    %c0_1 = arith.constant 0 : index
    %3 = vector.load %arg16[%c0, %c0_1] : memref<16x32xf32, #tpu.memory_space<vmem>>, vector<16x32xf32>
    %c0_2 = arith.constant 0 : index
    %c0_3 = arith.constant 0 : index
    %4 = vector.load %arg3[%c0_2, %c0_3] : memref<64x32xf32, #tpu.memory_space<vmem>>, vector<64x32xf32>
    %5 = arith.truncf %3 : vector<16x32xf32> to vector<16x32xbf16>
    %c0_4 = arith.constant 0 : index
    %c0_5 = arith.constant 0 : index
    %c0_6 = arith.constant 0 : index
    %6 = vector.load %arg4[%c0_4, %c0_5, %c0_6] : memref<1x32x96xbf16, #tpu.memory_space<vmem>>, vector<1x32x96xbf16>
    %7 = vector.shape_cast %6 : vector<1x32x96xbf16> to vector<32x96xbf16>
    %cst = arith.constant dense<0.000000e+00> : vector<16x96xf32>
    %8 = tpu.matmul %5, %7, %cst {dimension_numbers = #tpu.dot_dimension_numbers<[1], [0], [0], [1], [0, 0, 1, 1], [], []>} : vector<16x32xbf16>, vector<32x96xbf16>, vector<16x96xf32> -> vector<16x96xf32>
    %c0_7 = arith.constant 0 : index
    %c0_8 = arith.constant 0 : index
    %c0_9 = arith.constant 0 : index
    %9 = vector.load %arg5[%c0_7, %c0_8, %c0_9] : memref<1x1x96xf32, #tpu.memory_space<vmem>>, vector<1x1x96xf32>
    %10 = vector.shape_cast %9 : vector<1x1x96xf32> to vector<1x96xf32>
    %11 = vector.broadcast %10 : vector<1x96xf32> to vector<16x96xf32>
    %12 = arith.addf %8, %11 : vector<16x96xf32>
    %13 = vector.extract_strided_slice %12 {offsets = [0, 0], sizes = [8, 96], strides = [1, 1]} : vector<16x96xf32> to vector<8x96xf32>
    %14 = vector.extract_strided_slice %13 {offsets = [0, 0], sizes = [8, 32], strides = [1, 1]} : vector<8x96xf32> to vector<8x32xf32>
    %15 = vector.extract_strided_slice %13 {offsets = [0, 32], sizes = [8, 32], strides = [1, 1]} : vector<8x96xf32> to vector<8x32xf32>
    %16 = vector.extract_strided_slice %13 {offsets = [0, 64], sizes = [8, 32], strides = [1, 1]} : vector<8x96xf32> to vector<8x32xf32>
    %c0_10 = arith.constant 0 : index
    %c0_11 = arith.constant 0 : index
    %c0_12 = arith.constant 0 : index
    %17 = vector.load %arg2[%c0_10, %c0_11, %c0_12] : memref<2x1x8xf32, #tpu.memory_space<vmem>>, vector<1x1x8xf32>
    %18 = vector.shape_cast %17 : vector<1x1x8xf32> to vector<1x8xf32>
    %19 = vector.shape_cast %14 : vector<8x32xf32> to vector<1x8x32xf32>
    %20 = vector.broadcast %19 : vector<1x8x32xf32> to vector<8x8x32xf32>
    %21 = vector.shape_cast %20 : vector<8x8x32xf32> to vector<64x32xf32>
    %22 = arith.mulf %21, %4 : vector<64x32xf32>
    %cst_13 = arith.constant dense<0.000000e+00> : vector<64x8xf32>
    %23 = tpu.matmul %22, %15, %cst_13 {dimension_numbers = #tpu.dot_dimension_numbers<[1], [1], [0], [0], [0, 0, 1, 0], [], []>} : vector<64x32xf32>, vector<8x32xf32>, vector<64x8xf32> -> vector<64x8xf32>
    %24 = vector.broadcast %18 : vector<1x8xf32> to vector<64x8xf32>
    %25 = arith.addf %23, %24 : vector<64x8xf32>
    %cst_14 = arith.constant dense<0xFF800000> : vector<64xf32>
    %26 = vector.multi_reduction <maximumf>, %25, %cst_14 [1] : vector<64x8xf32> to vector<64xf32>
    %27 = vector.shape_cast %26 : vector<64xf32> to vector<64x1xf32>
    %28 = vector.broadcast %27 : vector<64x1xf32> to vector<64x8xf32>
    %29 = arith.subf %25, %28 : vector<64x8xf32>
    %30 = math.exp %29 : vector<64x8xf32>
    %cst_15 = arith.constant dense<0.000000e+00> : vector<64xf32>
    %31 = vector.multi_reduction <add>, %30, %cst_15 [1] : vector<64x8xf32> to vector<64xf32>
    %32 = vector.shape_cast %31 : vector<64xf32> to vector<64x1xf32>
    %33 = tpu.reciprocal %32 {approx = true} : vector<64x1xf32> -> vector<64x1xf32>
    %34 = vector.broadcast %33 : vector<64x1xf32> to vector<64x8xf32>
    %35 = arith.mulf %30, %34 : vector<64x8xf32>
    %cst_16 = arith.constant dense<0.000000e+00> : vector<64x32xf32>
    %36 = tpu.matmul %35, %16, %cst_16 {dimension_numbers = #tpu.dot_dimension_numbers<[1], [0], [0], [1], [0, 0, 1, 1], [], []>} : vector<64x8xf32>, vector<8x32xf32>, vector<64x32xf32> -> vector<64x32xf32>
    %37 = arith.mulf %36, %4 : vector<64x32xf32>
    %38 = vector.shape_cast %37 : vector<64x32xf32> to vector<8x8x32xf32>
    %cst_17 = arith.constant dense<0.000000e+00> : vector<8x32xf32>
    %39 = vector.multi_reduction <add>, %38, %cst_17 [0] : vector<8x8x32xf32> to vector<8x32xf32>
    %40 = vector.extract_strided_slice %12 {offsets = [8, 0], sizes = [8, 96], strides = [1, 1]} : vector<16x96xf32> to vector<8x96xf32>
    %41 = vector.extract_strided_slice %40 {offsets = [0, 0], sizes = [8, 32], strides = [1, 1]} : vector<8x96xf32> to vector<8x32xf32>
    %42 = vector.extract_strided_slice %40 {offsets = [0, 32], sizes = [8, 32], strides = [1, 1]} : vector<8x96xf32> to vector<8x32xf32>
    %43 = vector.extract_strided_slice %40 {offsets = [0, 64], sizes = [8, 32], strides = [1, 1]} : vector<8x96xf32> to vector<8x32xf32>
    %c1 = arith.constant 1 : index
    %c0_18 = arith.constant 0 : index
    %c0_19 = arith.constant 0 : index
    %44 = vector.load %arg2[%c1, %c0_18, %c0_19] : memref<2x1x8xf32, #tpu.memory_space<vmem>>, vector<1x1x8xf32>
    %45 = vector.shape_cast %44 : vector<1x1x8xf32> to vector<1x8xf32>
    %46 = vector.shape_cast %41 : vector<8x32xf32> to vector<1x8x32xf32>
    %47 = vector.broadcast %46 : vector<1x8x32xf32> to vector<8x8x32xf32>
    %48 = vector.shape_cast %47 : vector<8x8x32xf32> to vector<64x32xf32>
    %49 = arith.mulf %48, %4 : vector<64x32xf32>
    %cst_20 = arith.constant dense<0.000000e+00> : vector<64x8xf32>
    %50 = tpu.matmul %49, %42, %cst_20 {dimension_numbers = #tpu.dot_dimension_numbers<[1], [1], [0], [0], [0, 0, 1, 0], [], []>} : vector<64x32xf32>, vector<8x32xf32>, vector<64x8xf32> -> vector<64x8xf32>
    %51 = vector.broadcast %45 : vector<1x8xf32> to vector<64x8xf32>
    %52 = arith.addf %50, %51 : vector<64x8xf32>
    %cst_21 = arith.constant dense<0xFF800000> : vector<64xf32>
    %53 = vector.multi_reduction <maximumf>, %52, %cst_21 [1] : vector<64x8xf32> to vector<64xf32>
    %54 = vector.shape_cast %53 : vector<64xf32> to vector<64x1xf32>
    %55 = vector.broadcast %54 : vector<64x1xf32> to vector<64x8xf32>
    %56 = arith.subf %52, %55 : vector<64x8xf32>
    %57 = math.exp %56 : vector<64x8xf32>
    %cst_22 = arith.constant dense<0.000000e+00> : vector<64xf32>
    %58 = vector.multi_reduction <add>, %57, %cst_22 [1] : vector<64x8xf32> to vector<64xf32>
    %59 = vector.shape_cast %58 : vector<64xf32> to vector<64x1xf32>
    %60 = tpu.reciprocal %59 {approx = true} : vector<64x1xf32> -> vector<64x1xf32>
    %61 = vector.broadcast %60 : vector<64x1xf32> to vector<64x8xf32>
    %62 = arith.mulf %57, %61 : vector<64x8xf32>
    %cst_23 = arith.constant dense<0.000000e+00> : vector<64x32xf32>
    %63 = tpu.matmul %62, %43, %cst_23 {dimension_numbers = #tpu.dot_dimension_numbers<[1], [0], [0], [1], [0, 0, 1, 1], [], []>} : vector<64x8xf32>, vector<8x32xf32>, vector<64x32xf32> -> vector<64x32xf32>
    %64 = arith.mulf %63, %4 : vector<64x32xf32>
    %65 = vector.shape_cast %64 : vector<64x32xf32> to vector<8x8x32xf32>
    %cst_24 = arith.constant dense<0.000000e+00> : vector<8x32xf32>
    %66 = vector.multi_reduction <add>, %65, %cst_24 [0] : vector<8x8x32xf32> to vector<8x32xf32>
    %c1_i32 = arith.constant 1 : i32
    %67 = arith.cmpi eq, %arg0, %c1_i32 : i32
    %68 = arith.extui %67 : i1 to i32
    %c0_i32_25 = arith.constant 0 : i32
    %69 = arith.cmpi ne, %68, %c0_i32_25 : i32
    scf.if %69 {
      %163 = vector.shape_cast %35 : vector<64x8xf32> to vector<1x64x8xf32>
      %164 = vector.shape_cast %62 : vector<64x8xf32> to vector<1x64x8xf32>
      %165 = tpu.concatenate %163, %164 in 0 : vector<1x64x8xf32>, vector<1x64x8xf32> -> vector<2x64x8xf32>
      %166 = vector.shape_cast %165 : vector<2x64x8xf32> to vector<2x8x8x8xf32>
      %c0_75 = arith.constant 0 : index
      %c0_76 = arith.constant 0 : index
      %c0_77 = arith.constant 0 : index
      %c0_78 = arith.constant 0 : index
      %167 = vector.load %arg17[%c0_75, %c0_76, %c0_77, %c0_78] : memref<2x8x8x8xf32, #tpu.memory_space<vmem>>, vector<2x8x8x8xf32>
      tpu.vector_store %arg17[%c0_75, %c0_76, %c0_77, %c0_78], %166 {strides = array<i32>} : memref<2x8x8x8xf32, #tpu.memory_space<vmem>>, vector<2x8x8x8xf32>,
    } else {
    }
    %70 = tpu.concatenate %39, %66 in 0 : vector<8x32xf32>, vector<8x32xf32> -> vector<16x32xf32>
    %71 = arith.truncf %70 : vector<16x32xf32> to vector<16x32xbf16>
    %c0_26 = arith.constant 0 : index
    %c0_27 = arith.constant 0 : index
    %c0_28 = arith.constant 0 : index
    %72 = vector.load %arg6[%c0_26, %c0_27, %c0_28] : memref<1x32x32xbf16, #tpu.memory_space<vmem>>, vector<1x32x32xbf16>
    %73 = vector.shape_cast %72 : vector<1x32x32xbf16> to vector<32x32xbf16>
    %cst_29 = arith.constant dense<0.000000e+00> : vector<16x32xf32>
    %74 = tpu.matmul %71, %73, %cst_29 {dimension_numbers = #tpu.dot_dimension_numbers<[1], [0], [0], [1], [0, 0, 1, 1], [], []>} : vector<16x32xbf16>, vector<32x32xbf16>, vector<16x32xf32> -> vector<16x32xf32>
    %c0_30 = arith.constant 0 : index
    %c0_31 = arith.constant 0 : index
    %c0_32 = arith.constant 0 : index
    %75 = vector.load %arg7[%c0_30, %c0_31, %c0_32] : memref<1x1x32xf32, #tpu.memory_space<vmem>>, vector<1x1x32xf32>
    %76 = vector.shape_cast %75 : vector<1x1x32xf32> to vector<1x32xf32>
    %77 = vector.broadcast %76 : vector<1x32xf32> to vector<16x32xf32>
    %78 = arith.addf %74, %77 : vector<16x32xf32>
    %79 = arith.addf %3, %78 : vector<16x32xf32>
    %c0_33 = arith.constant 0 : index
    %c0_34 = arith.constant 0 : index
    %c0_35 = arith.constant 0 : index
    %80 = vector.load %arg8[%c0_33, %c0_34, %c0_35] : memref<1x1x32xf32, #tpu.memory_space<vmem>>, vector<1x1x32xf32>
    %81 = vector.shape_cast %80 : vector<1x1x32xf32> to vector<1x32xf32>
    %c0_36 = arith.constant 0 : index
    %c0_37 = arith.constant 0 : index
    %c0_38 = arith.constant 0 : index
    %82 = vector.load %arg9[%c0_36, %c0_37, %c0_38] : memref<1x1x32xf32, #tpu.memory_space<vmem>>, vector<1x1x32xf32>
    %83 = vector.shape_cast %82 : vector<1x1x32xf32> to vector<1x32xf32>
    %cst_39 = arith.constant dense<0.000000e+00> : vector<16xf32>
    %84 = vector.multi_reduction <add>, %79, %cst_39 [1] : vector<16x32xf32> to vector<16xf32>
    %85 = vector.shape_cast %84 : vector<16xf32> to vector<16x1xf32>
    %cst_40 = arith.constant 3.200000e+01 : f32
    %86 = vector.broadcast %cst_40 : f32 to vector<16x1xf32>
    %87 = arith.divf %85, %86 : vector<16x1xf32>
    %88 = arith.mulf %79, %79 : vector<16x32xf32>
    %cst_41 = arith.constant dense<0.000000e+00> : vector<16xf32>
    %89 = vector.multi_reduction <add>, %88, %cst_41 [1] : vector<16x32xf32> to vector<16xf32>
    %90 = vector.shape_cast %89 : vector<16xf32> to vector<16x1xf32>
    %cst_42 = arith.constant 3.200000e+01 : f32
    %91 = vector.broadcast %cst_42 : f32 to vector<16x1xf32>
    %92 = arith.divf %90, %91 : vector<16x1xf32>
    %93 = vector.broadcast %87 : vector<16x1xf32> to vector<16x32xf32>
    %94 = arith.subf %79, %93 : vector<16x32xf32>
    %95 = arith.mulf %87, %87 : vector<16x1xf32>
    %96 = arith.subf %92, %95 : vector<16x1xf32>
    %cst_43 = arith.constant 9.99999997E-7 : f32
    %97 = vector.broadcast %cst_43 : f32 to vector<16x1xf32>
    %98 = arith.addf %96, %97 : vector<16x1xf32>
    %99 = math.rsqrt %98 : vector<16x1xf32>
    %100 = vector.broadcast %99 : vector<16x1xf32> to vector<16x32xf32>
    %101 = arith.mulf %94, %100 : vector<16x32xf32>
    %102 = vector.broadcast %81 : vector<1x32xf32> to vector<16x32xf32>
    %103 = arith.mulf %101, %102 : vector<16x32xf32>
    %104 = vector.broadcast %83 : vector<1x32xf32> to vector<16x32xf32>
    %105 = arith.addf %103, %104 : vector<16x32xf32>
    %106 = arith.truncf %105 : vector<16x32xf32> to vector<16x32xbf16>
    %c0_44 = arith.constant 0 : index
    %c0_45 = arith.constant 0 : index
    %c0_46 = arith.constant 0 : index
    %107 = vector.load %arg10[%c0_44, %c0_45, %c0_46] : memref<1x32x128xbf16, #tpu.memory_space<vmem>>, vector<1x32x128xbf16>
    %108 = vector.shape_cast %107 : vector<1x32x128xbf16> to vector<32x128xbf16>
    %cst_47 = arith.constant dense<0.000000e+00> : vector<16x128xf32>
    %109 = tpu.matmul %106, %108, %cst_47 {dimension_numbers = #tpu.dot_dimension_numbers<[1], [0], [0], [1], [0, 0, 1, 1], [], []>} : vector<16x32xbf16>, vector<32x128xbf16>, vector<16x128xf32> -> vector<16x128xf32>
    %c0_48 = arith.constant 0 : index
    %c0_49 = arith.constant 0 : index
    %c0_50 = arith.constant 0 : index
    %110 = vector.load %arg11[%c0_48, %c0_49, %c0_50] : memref<1x1x128xf32, #tpu.memory_space<vmem>>, vector<1x1x128xf32>
    %111 = vector.shape_cast %110 : vector<1x1x128xf32> to vector<1x128xf32>
    %112 = vector.broadcast %111 : vector<1x128xf32> to vector<16x128xf32>
    %113 = arith.addf %109, %112 : vector<16x128xf32>
    %cst_51 = arith.constant 5.000000e-01 : f32
    %114 = vector.broadcast %cst_51 : f32 to vector<16x128xf32>
    %115 = arith.mulf %114, %113 : vector<16x128xf32>
    %116 = arith.mulf %113, %113 : vector<16x128xf32>
    %117 = arith.mulf %116, %113 : vector<16x128xf32>
    %cst_52 = arith.constant 4.471500e-02 : f32
    %118 = vector.broadcast %cst_52 : f32 to vector<16x128xf32>
    %119 = arith.mulf %118, %117 : vector<16x128xf32>
    %120 = arith.addf %113, %119 : vector<16x128xf32>
    %cst_53 = arith.constant 0.797884583 : f32
    %121 = vector.broadcast %cst_53 : f32 to vector<16x128xf32>
    %122 = arith.mulf %121, %120 : vector<16x128xf32>
    %123 = math.tanh %122 : vector<16x128xf32>
    %cst_54 = arith.constant 1.000000e+00 : f32
    %124 = vector.broadcast %cst_54 : f32 to vector<16x128xf32>
    %125 = arith.addf %124, %123 : vector<16x128xf32>
    %126 = arith.mulf %115, %125 : vector<16x128xf32>
    %127 = arith.truncf %126 : vector<16x128xf32> to vector<16x128xbf16>
    %c0_55 = arith.constant 0 : index
    %c0_56 = arith.constant 0 : index
    %c0_57 = arith.constant 0 : index
    %128 = vector.load %arg12[%c0_55, %c0_56, %c0_57] : memref<1x128x32xbf16, #tpu.memory_space<vmem>>, vector<1x128x32xbf16>
    %129 = vector.shape_cast %128 : vector<1x128x32xbf16> to vector<128x32xbf16>
    %cst_58 = arith.constant dense<0.000000e+00> : vector<16x32xf32>
    %130 = tpu.matmul %127, %129, %cst_58 {dimension_numbers = #tpu.dot_dimension_numbers<[1], [0], [0], [1], [0, 0, 1, 1], [], []>} : vector<16x128xbf16>, vector<128x32xbf16>, vector<16x32xf32> -> vector<16x32xf32>
    %c0_59 = arith.constant 0 : index
    %c0_60 = arith.constant 0 : index
    %c0_61 = arith.constant 0 : index
    %131 = vector.load %arg13[%c0_59, %c0_60, %c0_61] : memref<1x1x32xf32, #tpu.memory_space<vmem>>, vector<1x1x32xf32>
    %132 = vector.shape_cast %131 : vector<1x1x32xf32> to vector<1x32xf32>
    %133 = vector.broadcast %132 : vector<1x32xf32> to vector<16x32xf32>
    %134 = arith.addf %130, %133 : vector<16x32xf32>
    %135 = arith.addf %105, %134 : vector<16x32xf32>
    %c0_62 = arith.constant 0 : index
    %c0_63 = arith.constant 0 : index
    %c0_64 = arith.constant 0 : index
    %136 = vector.load %arg14[%c0_62, %c0_63, %c0_64] : memref<1x1x32xf32, #tpu.memory_space<vmem>>, vector<1x1x32xf32>
    %137 = vector.shape_cast %136 : vector<1x1x32xf32> to vector<1x32xf32>
    %c0_65 = arith.constant 0 : index
    %c0_66 = arith.constant 0 : index
    %c0_67 = arith.constant 0 : index
    %138 = vector.load %arg15[%c0_65, %c0_66, %c0_67] : memref<1x1x32xf32, #tpu.memory_space<vmem>>, vector<1x1x32xf32>
    %139 = vector.shape_cast %138 : vector<1x1x32xf32> to vector<1x32xf32>
    %cst_68 = arith.constant dense<0.000000e+00> : vector<16xf32>
    %140 = vector.multi_reduction <add>, %135, %cst_68 [1] : vector<16x32xf32> to vector<16xf32>
    %141 = vector.shape_cast %140 : vector<16xf32> to vector<16x1xf32>
    %cst_69 = arith.constant 3.200000e+01 : f32
    %142 = vector.broadcast %cst_69 : f32 to vector<16x1xf32>
    %143 = arith.divf %141, %142 : vector<16x1xf32>
    %144 = arith.mulf %135, %135 : vector<16x32xf32>
    %cst_70 = arith.constant dense<0.000000e+00> : vector<16xf32>
    %145 = vector.multi_reduction <add>, %144, %cst_70 [1] : vector<16x32xf32> to vector<16xf32>
    %146 = vector.shape_cast %145 : vector<16xf32> to vector<16x1xf32>
    %cst_71 = arith.constant 3.200000e+01 : f32
    %147 = vector.broadcast %cst_71 : f32 to vector<16x1xf32>
    %148 = arith.divf %146, %147 : vector<16x1xf32>
    %149 = vector.broadcast %143 : vector<16x1xf32> to vector<16x32xf32>
    %150 = arith.subf %135, %149 : vector<16x32xf32>
    %151 = arith.mulf %143, %143 : vector<16x1xf32>
    %152 = arith.subf %148, %151 : vector<16x1xf32>
    %cst_72 = arith.constant 9.99999997E-7 : f32
    %153 = vector.broadcast %cst_72 : f32 to vector<16x1xf32>
    %154 = arith.addf %152, %153 : vector<16x1xf32>
    %155 = math.rsqrt %154 : vector<16x1xf32>
    %156 = vector.broadcast %155 : vector<16x1xf32> to vector<16x32xf32>
    %157 = arith.mulf %150, %156 : vector<16x32xf32>
    %158 = vector.broadcast %137 : vector<1x32xf32> to vector<16x32xf32>
    %159 = arith.mulf %157, %158 : vector<16x32xf32>
    %160 = vector.broadcast %139 : vector<1x32xf32> to vector<16x32xf32>
    %161 = arith.addf %159, %160 : vector<16x32xf32>
    %c0_73 = arith.constant 0 : index
    %c0_74 = arith.constant 0 : index
    %162 = vector.load %arg16[%c0_73, %c0_74] : memref<16x32xf32, #tpu.memory_space<vmem>>, vector<16x32xf32>
    tpu.vector_store %arg16[%c0_73, %c0_74], %161 {strides = array<i32>} : memref<16x32xf32, #tpu.memory_space<vmem>>, vector<16x32xf32>,
    return
  }
  func.func @transform_0(%arg0: i32) -> (i32, i32) {
    %c0_i32 = arith.constant 0 : i32
    %c0_i32_0 = arith.constant 0 : i32
    %c0_i32_1 = arith.constant 0 : i32
    return %c0_i32, %c0_i32_0 : i32, i32
  }
  func.func @transform_1(%arg0: i32) -> (i32, i32, i32) {
    %c0_i32 = arith.constant 0 : i32
    %c0_i32_0 = arith.constant 0 : i32
    %c0_i32_1 = arith.constant 0 : i32
    %c0_i32_2 = arith.constant 0 : i32
    return %c0_i32, %c0_i32_0, %c0_i32_1 : i32, i32, i32
  }
  func.func @transform_2(%arg0: i32) -> (i32, i32) {
    %c0_i32 = arith.constant 0 : i32
    %c0_i32_0 = arith.constant 0 : i32
    %c0_i32_1 = arith.constant 0 : i32
    return %c0_i32, %c0_i32_0 : i32, i32
  }
  func.func @transform_3(%arg0: i32) -> (i32, i32, i32) {
    %c0_i32 = arith.constant 0 : i32
    %c0_i32_0 = arith.constant 0 : i32
    %c0_i32_1 = arith.constant 0 : i32
    return %arg0, %c0_i32, %c0_i32_0 : i32, i32, i32
  }
  func.func @transform_4(%arg0: i32) -> (i32, i32, i32) {
    %c0_i32 = arith.constant 0 : i32
    %c0_i32_0 = arith.constant 0 : i32
    %c0_i32_1 = arith.constant 0 : i32
    return %arg0, %c0_i32, %c0_i32_0 : i32, i32, i32
  }
  func.func @transform_5(%arg0: i32) -> (i32, i32, i32) {
    %c0_i32 = arith.constant 0 : i32
    %c0_i32_0 = arith.constant 0 : i32
    %c0_i32_1 = arith.constant 0 : i32
    return %arg0, %c0_i32, %c0_i32_0 : i32, i32, i32
  }
  func.func @transform_6(%arg0: i32) -> (i32, i32, i32) {
    %c0_i32 = arith.constant 0 : i32
    %c0_i32_0 = arith.constant 0 : i32
    %c0_i32_1 = arith.constant 0 : i32
    return %arg0, %c0_i32, %c0_i32_0 : i32, i32, i32
  }
  func.func @transform_7(%arg0: i32) -> (i32, i32, i32) {
    %c0_i32 = arith.constant 0 : i32
    %c0_i32_0 = arith.constant 0 : i32
    %c0_i32_1 = arith.constant 0 : i32
    return %arg0, %c0_i32, %c0_i32_0 : i32, i32, i32
  }
  func.func @transform_8(%arg0: i32) -> (i32, i32, i32) {
    %c0_i32 = arith.constant 0 : i32
    %c0_i32_0 = arith.constant 0 : i32
    %c0_i32_1 = arith.constant 0 : i32
    return %arg0, %c0_i32, %c0_i32_0 : i32, i32, i32
  }
  func.func @transform_9(%arg0: i32) -> (i32, i32, i32) {
    %c0_i32 = arith.constant 0 : i32
    %c0_i32_0 = arith.constant 0 : i32
    %c0_i32_1 = arith.constant 0 : i32
    return %arg0, %c0_i32, %c0_i32_0 : i32, i32, i32
  }
  func.func @transform_10(%arg0: i32) -> (i32, i32, i32) {
    %c0_i32 = arith.constant 0 : i32
    %c0_i32_0 = arith.constant 0 : i32
    %c0_i32_1 = arith.constant 0 : i32
    return %arg0, %c0_i32, %c0_i32_0 : i32, i32, i32
  }
  func.func @transform_11(%arg0: i32) -> (i32, i32, i32) {
    %c0_i32 = arith.constant 0 : i32
    %c0_i32_0 = arith.constant 0 : i32
    %c0_i32_1 = arith.constant 0 : i32
    return %arg0, %c0_i32, %c0_i32_0 : i32, i32, i32
  }
  func.func @transform_12(%arg0: i32) -> (i32, i32, i32) {
    %c0_i32 = arith.constant 0 : i32
    %c0_i32_0 = arith.constant 0 : i32
    %c0_i32_1 = arith.constant 0 : i32
    return %arg0, %c0_i32, %c0_i32_0 : i32, i32, i32
  }
  func.func @transform_13(%arg0: i32) -> (i32, i32, i32) {
    %c0_i32 = arith.constant 0 : i32
    %c0_i32_0 = arith.constant 0 : i32
    %c0_i32_1 = arith.constant 0 : i32
    return %arg0, %c0_i32, %c0_i32_0 : i32, i32, i32
  }
  func.func @transform_14(%arg0: i32) -> (i32, i32, i32) {
    %c0_i32 = arith.constant 0 : i32
    %c0_i32_0 = arith.constant 0 : i32
    %c0_i32_1 = arith.constant 0 : i32
    return %arg0, %c0_i32, %c0_i32_0 : i32, i32, i32
  }
  func.func @transform_15(%arg0: i32) -> (i32, i32) {
    %c0_i32 = arith.constant 0 : i32
    %c0_i32_0 = arith.constant 0 : i32
    %c0_i32_1 = arith.constant 0 : i32
    return %c0_i32, %c0_i32_0 : i32, i32
  }
  func.func @transform_16(%arg0: i32) -> (i32, i32, i32, i32) {
    %c0_i32 = arith.constant 0 : i32
    %c0_i32_0 = arith.constant 0 : i32
    %c0_i32_1 = arith.constant 0 : i32
    %c0_i32_2 = arith.constant 0 : i32
    %c0_i32_3 = arith.constant 0 : i32
    return %c0_i32, %c0_i32_0, %c0_i32_1, %c0_i32_2 : i32, i32, i32, i32
  }
}

</mosaic_0001>

<llo_original>
// kernel: tpu_custom_call.1
$region0: #{tpu_custom_call.1}
  #allocation0 [shape = 'u32[]', space=smem, size = 0x4, offset = 0x4, fixed_abs, tag = 'smem constant byte address 0x4 - core index']
  #allocation1 [shape = 'u32[144,128]{1,0:T(1,128)}', space=vmem, size = 0x12000, scoped, tag = 'internal scratch']
  %s0 = inlined_call_operand.vmem [shape: f32[16,32], index: 0, kind: input, shape index: {}]
  %s1 = inlined_call_operand.vmem [shape: f32[2,1,8], index: 1, kind: input, shape index: {}]
  %s2 = inlined_call_operand.vmem [shape: f32[64,32], index: 2, kind: input, shape index: {}]
  %s3 = inlined_call_operand.vmem [shape: bf16[2,32,96], index: 3, kind: input, shape index: {}]
  %s4 = inlined_call_operand.vmem [shape: f32[2,1,96], index: 4, kind: input, shape index: {}]
  %s5 = inlined_call_operand.vmem [shape: bf16[2,32,32], index: 5, kind: input, shape index: {}]
  %s6 = inlined_call_operand.vmem [shape: f32[2,1,32], index: 6, kind: input, shape index: {}]
  %s7 = inlined_call_operand.vmem [shape: f32[2,1,32], index: 7, kind: input, shape index: {}]
  %s8 = inlined_call_operand.vmem [shape: f32[2,1,32], index: 8, kind: input, shape index: {}]
  %s9 = inlined_call_operand.vmem [shape: bf16[2,32,128], index: 9, kind: input, shape index: {}]
  %s10 = inlined_call_operand.vmem [shape: f32[2,1,128], index: 10, kind: input, shape index: {}]
  %s11 = inlined_call_operand.vmem [shape: bf16[2,128,32], index: 11, kind: input, shape index: {}]
  %s12 = inlined_call_operand.vmem [shape: f32[2,1,32], index: 12, kind: input, shape index: {}]
  %s13 = inlined_call_operand.vmem [shape: f32[2,1,32], index: 13, kind: input, shape index: {}]
  %s14 = inlined_call_operand.vmem [shape: f32[2,1,32], index: 14, kind: input, shape index: {}]
  %s15 = inlined_call_operand.hbm [shape: f32[16,32], index: 15, kind: output, shape index: {0}]
  %s16 = inlined_call_operand.hbm [shape: f32[2,8,8,8], index: 16, kind: output, shape index: {1}]
  %17 = xla_tuple %s15, %s16
  %s18 = sld [smem:[#allocation0]]
  $region109: #{tpu_custom_call.1} parent=0
    _
  %s20 = ssub.s32 1, %s18
  %s21 = scalar_select 0, %s20, %s18
  $region1: #{tpu_custom_call.1} parent=0
    #allocation2 [shape = 'u8[8192]{0}', space=vmem, size = 0x2000, scoped, tag = 'output window, operand 0, single buffered']
    #allocation3 [shape = 's32[2]{0}', space=sflag, size = 0x8, scoped, tag = 'scoped memory for tpu_custom_call.1']
    #allocation4 [shape = 'u8[65536]{0}', space=vmem, size = 0x10000, scoped, tag = 'output window, operand 1, single buffered']
    #allocation5 [shape = 's32[1]{0}', space=sflag, size = 0x4, scoped, tag = 'scoped memory for tpu_custom_call.1']
    %22 = vsyncpa [#allocation3], 0
    %23 = vsyncpa [#allocation5], 0
    loop: start=0, step=1, limit=4
    $region2: #{tpu_custom_call.1} parent=1 // loop_pre_header
      _
    $region3: #{tpu_custom_call.1} parent=1 // loop_header
      %s25 = sphi 0, %s29
      %p26 = scmp.ge.s32.totalorder %s25, 4
      %s33 = sphi 0, %s33
      %s35 = sphi 0, %s33
      %s36 = sphi 0, %s35
      %s50 = sphi 0, %s36
      %s54 = sphi 0, %s54
      %s56 = sphi 0, %s54
      %s57 = sphi 0, %s56
      %s71 = sphi 0, %s57
      %s75 = sphi 0, %s75
      %s77 = sphi 0, %s75
      %s78 = sphi 0, %s77
      %s92 = sphi 0, %s78
      %s98 = sphi 0, %s100
      %s101 = sphi 0, %s98
      %s102 = sphi 0, %s101
      %s118 = sphi 0, %s102
      %s124 = sphi 0, %s126
      %s127 = sphi 0, %s124
      %s128 = sphi 0, %s127
      %s144 = sphi 0, %s128
      %s150 = sphi 0, %s152
      %s153 = sphi 0, %s150
      %s154 = sphi 0, %s153
      %s170 = sphi 0, %s154
      %s176 = sphi 0, %s178
      %s179 = sphi 0, %s176
      %s180 = sphi 0, %s179
      %s196 = sphi 0, %s180
      %s202 = sphi 0, %s204
      %s205 = sphi 0, %s202
      %s206 = sphi 0, %s205
      %s222 = sphi 0, %s206
      %s228 = sphi 0, %s230
      %s231 = sphi 0, %s228
      %s232 = sphi 0, %s231
      %s248 = sphi 0, %s232
      %s254 = sphi 0, %s256
      %s257 = sphi 0, %s254
      %s258 = sphi 0, %s257
      %s274 = sphi 0, %s258
      %s280 = sphi 0, %s282
      %s283 = sphi 0, %s280
      %s284 = sphi 0, %s283
      %s300 = sphi 0, %s284
      %s306 = sphi 0, %s308
      %s309 = sphi 0, %s306
      %s310 = sphi 0, %s309
      %s326 = sphi 0, %s310
      %s332 = sphi 0, %s334
      %s335 = sphi 0, %s332
      %s336 = sphi 0, %s335
      %s352 = sphi 0, %s336
      %s358 = sphi 0, %s360
      %s361 = sphi 0, %s358
      %s362 = sphi 0, %s361
      %s378 = sphi 0, %s362
      %s384 = sphi 0, %s386
      %s387 = sphi 0, %s384
      %s388 = sphi 0, %s387
      %s404 = sphi 0, %s388
      %s408 = sphi 0, %s408
      %s410 = sphi 0, %s408
      %s411 = sphi 0, %s410
      %s425 = sphi 0, %s411
      %s429 = sphi 0, %s429
      %s431 = sphi 0, %s429
      %s432 = sphi 0, %s431
      %s446 = sphi 0, %s432
    $region4: #{tpu_custom_call.1} parent=1 // loop_header_branch
      %28 = sbr.rel (%p26) target = $region8
    $region5: #{tpu_custom_call.1} parent=1 // loop_body
      %s30 = ssub.s32 %s25, 1
      %s31 = ssub.s32 %s25, 2
      %s32 = sadd.s32 %s25, 1
      %s34 = sadd.s32 %s33, 1
      %p37 = scmp.eq.s32.totalorder %s25, 1
      %p38 = scmp.ne.s32.totalorder %s33, %s35
      %p39 = scmp.eq.s32.totalorder %s25, 0
      %p40 = por %p38, %p39
      %p41 = scmp.ne.s32.totalorder %s33, %s35
      %p42 = scmp.eq.s32.totalorder %s30, 1
      %p43 = por %p41, %p42
      %p44 = scmp.ne.s32.totalorder %s35, %s36
      %p45 = scmp.eq.s32.totalorder %s30, 0
      %p46 = por %p44, %p45
      %p47 = scmp.ne.s32.totalorder %s35, %s36
      %p48 = scmp.eq.s32.totalorder %s31, 1
      %p49 = por %p47, %p48
      %p51 = scmp.ne.s32.totalorder %s36, %s50
      %p52 = scmp.eq.s32.totalorder %s31, 0
      %p53 = por %p51, %p52
      %s55 = sadd.s32 %s54, 1
      %p58 = scmp.eq.s32.totalorder %s25, 1
      %p59 = scmp.ne.s32.totalorder %s54, %s56
      %p60 = scmp.eq.s32.totalorder %s25, 0
      %p61 = por %p59, %p60
      %p62 = scmp.ne.s32.totalorder %s54, %s56
      %p63 = scmp.eq.s32.totalorder %s30, 1
      %p64 = por %p62, %p63
      %p65 = scmp.ne.s32.totalorder %s56, %s57
      %p66 = scmp.eq.s32.totalorder %s30, 0
      %p67 = por %p65, %p66
      %p68 = scmp.ne.s32.totalorder %s56, %s57
      %p69 = scmp.eq.s32.totalorder %s31, 1
      %p70 = por %p68, %p69
      %p72 = scmp.ne.s32.totalorder %s57, %s71
      %p73 = scmp.eq.s32.totalorder %s31, 0
      %p74 = por %p72, %p73
      %s76 = sadd.s32 %s75, 1
      %p79 = scmp.eq.s32.totalorder %s25, 1
      %p80 = scmp.ne.s32.totalorder %s75, %s77
      %p81 = scmp.eq.s32.totalorder %s25, 0
      %p82 = por %p80, %p81
      %p83 = scmp.ne.s32.totalorder %s75, %s77
      %p84 = scmp.eq.s32.totalorder %s30, 1
      %p85 = por %p83, %p84
      %p86 = scmp.ne.s32.totalorder %s77, %s78
      %p87 = scmp.eq.s32.totalorder %s30, 0
      %p88 = por %p86, %p87
      %p89 = scmp.ne.s32.totalorder %s77, %s78
      %p90 = scmp.eq.s32.totalorder %s31, 1
      %p91 = por %p89, %p90
      %p93 = scmp.ne.s32.totalorder %s78, %s92
      %p94 = scmp.eq.s32.totalorder %s31, 0
      %p95 = por %p93, %p94
      %s96 = ssub.s32 %s25, %s32
      %p97 = scmp.eq.s32.totalorder %s96, 0
      %s99 = sadd.s32 %s98, 1
      %s100 = scalar_select %p97, %s98, %s99
      %p103 = pneg %p97
      %p104 = scmp.eq.s32.totalorder %s25, 1
      %p105 = por %p103, %p104
      %p106 = scmp.ne.s32.totalorder %s98, %s101
      %p107 = scmp.eq.s32.totalorder %s25, 0
      %p108 = por %p106, %p107
      %p109 = scmp.ne.s32.totalorder %s98, %s101
      %p110 = scmp.eq.s32.totalorder %s30, 1
      %p111 = por %p109, %p110
      %p112 = scmp.ne.s32.totalorder %s101, %s102
      %p113 = scmp.eq.s32.totalorder %s30, 0
      %p114 = por %p112, %p113
      %p115 = scmp.ne.s32.totalorder %s101, %s102
      %p116 = scmp.eq.s32.totalorder %s31, 1
      %p117 = por %p115, %p116
      %p119 = scmp.ne.s32.totalorder %s102, %s118
      %p120 = scmp.eq.s32.totalorder %s31, 0
      %p121 = por %p119, %p120
      %s122 = ssub.s32 %s25, %s32
      %p123 = scmp.eq.s32.totalorder %s122, 0
      %s125 = sadd.s32 %s124, 1
      %s126 = scalar_select %p123, %s124, %s125
      %p129 = pneg %p123
      %p130 = scmp.eq.s32.totalorder %s25, 1
      %p131 = por %p129, %p130
      %p132 = scmp.ne.s32.totalorder %s124, %s127
      %p133 = scmp.eq.s32.totalorder %s25, 0
      %p134 = por %p132, %p133
      %p135 = scmp.ne.s32.totalorder %s124, %s127
      %p136 = scmp.eq.s32.totalorder %s30, 1
      %p137 = por %p135, %p136
      %p138 = scmp.ne.s32.totalorder %s127, %s128
      %p139 = scmp.eq.s32.totalorder %s30, 0
      %p140 = por %p138, %p139
      %p141 = scmp.ne.s32.totalorder %s127, %s128
      %p142 = scmp.eq.s32.totalorder %s31, 1
      %p143 = por %p141, %p142
      %p145 = scmp.ne.s32.totalorder %s128, %s144
      %p146 = scmp.eq.s32.totalorder %s31, 0
      %p147 = por %p145, %p146
      %s148 = ssub.s32 %s25, %s32
      %p149 = scmp.eq.s32.totalorder %s148, 0
      %s151 = sadd.s32 %s150, 1
      %s152 = scalar_select %p149, %s150, %s151
      %p155 = pneg %p149
      %p156 = scmp.eq.s32.totalorder %s25, 1
      %p157 = por %p155, %p156
      %p158 = scmp.ne.s32.totalorder %s150, %s153
      %p159 = scmp.eq.s32.totalorder %s25, 0
      %p160 = por %p158, %p159
      %p161 = scmp.ne.s32.totalorder %s150, %s153
      %p162 = scmp.eq.s32.totalorder %s30, 1
      %p163 = por %p161, %p162
      %p164 = scmp.ne.s32.totalorder %s153, %s154
      %p165 = scmp.eq.s32.totalorder %s30, 0
      %p166 = por %p164, %p165
      %p167 = scmp.ne.s32.totalorder %s153, %s154
      %p168 = scmp.eq.s32.totalorder %s31, 1
      %p169 = por %p167, %p168
      %p171 = scmp.ne.s32.totalorder %s154, %s170
      %p172 = scmp.eq.s32.totalorder %s31, 0
      %p173 = por %p171, %p172
      %s174 = ssub.s32 %s25, %s32
      %p175 = scmp.eq.s32.totalorder %s174, 0
      %s177 = sadd.s32 %s176, 1
      %s178 = scalar_select %p175, %s176, %s177
      %p181 = pneg %p175
      %p182 = scmp.eq.s32.totalorder %s25, 1
      %p183 = por %p181, %p182
      %p184 = scmp.ne.s32.totalorder %s176, %s179
      %p185 = scmp.eq.s32.totalorder %s25, 0
      %p186 = por %p184, %p185
      %p187 = scmp.ne.s32.totalorder %s176, %s179
      %p188 = scmp.eq.s32.totalorder %s30, 1
      %p189 = por %p187, %p188
      %p190 = scmp.ne.s32.totalorder %s179, %s180
      %p191 = scmp.eq.s32.totalorder %s30, 0
      %p192 = por %p190, %p191
      %p193 = scmp.ne.s32.totalorder %s179, %s180
      %p194 = scmp.eq.s32.totalorder %s31, 1
      %p195 = por %p193, %p194
      %p197 = scmp.ne.s32.totalorder %s180, %s196
      %p198 = scmp.eq.s32.totalorder %s31, 0
      %p199 = por %p197, %p198
      %s200 = ssub.s32 %s25, %s32
      %p201 = scmp.eq.s32.totalorder %s200, 0
      %s203 = sadd.s32 %s202, 1
      %s204 = scalar_select %p201, %s202, %s203
      %p207 = pneg %p201
      %p208 = scmp.eq.s32.totalorder %s25, 1
      %p209 = por %p207, %p208
      %p210 = scmp.ne.s32.totalorder %s202, %s205
      %p211 = scmp.eq.s32.totalorder %s25, 0
      %p212 = por %p210, %p211
      %p213 = scmp.ne.s32.totalorder %s202, %s205
      %p214 = scmp.eq.s32.totalorder %s30, 1
      %p215 = por %p213, %p214
      %p216 = scmp.ne.s32.totalorder %s205, %s206
      %p217 = scmp.eq.s32.totalorder %s30, 0
      %p218 = por %p216, %p217
      %p219 = scmp.ne.s32.totalorder %s205, %s206
      %p220 = scmp.eq.s32.totalorder %s31, 1
      %p221 = por %p219, %p220
      %p223 = scmp.ne.s32.totalorder %s206, %s222
      %p224 = scmp.eq.s32.totalorder %s31, 0
      %p225 = por %p223, %p224
      %s226 = ssub.s32 %s25, %s32
      %p227 = scmp.eq.s32.totalorder %s226, 0
      %s229 = sadd.s32 %s228, 1
      %s230 = scalar_select %p227, %s228, %s229
      %p233 = pneg %p227
      %p234 = scmp.eq.s32.totalorder %s25, 1
      %p235 = por %p233, %p234
      %p236 = scmp.ne.s32.totalorder %s228, %s231
      %p237 = scmp.eq.s32.totalorder %s25, 0
      %p238 = por %p236, %p237
      %p239 = scmp.ne.s32.totalorder %s228, %s231
      %p240 = scmp.eq.s32.totalorder %s30, 1
      %p241 = por %p239, %p240
      %p242 = scmp.ne.s32.totalorder %s231, %s232
      %p243 = scmp.eq.s32.totalorder %s30, 0
      %p244 = por %p242, %p243
      %p245 = scmp.ne.s32.totalorder %s231, %s232
      %p246 = scmp.eq.s32.totalorder %s31, 1
      %p247 = por %p245, %p246
      %p249 = scmp.ne.s32.totalorder %s232, %s248
      %p250 = scmp.eq.s32.totalorder %s31, 0
      %p251 = por %p249, %p250
      %s252 = ssub.s32 %s25, %s32
      %p253 = scmp.eq.s32.totalorder %s252, 0
      %s255 = sadd.s32 %s254, 1
      %s256 = scalar_select %p253, %s254, %s255
      %p259 = pneg %p253
      %p260 = scmp.eq.s32.totalorder %s25, 1
      %p261 = por %p259, %p260
      %p262 = scmp.ne.s32.totalorder %s254, %s257
      %p263 = scmp.eq.s32.totalorder %s25, 0
      %p264 = por %p262, %p263
      %p265 = scmp.ne.s32.totalorder %s254, %s257
      %p266 = scmp.eq.s32.totalorder %s30, 1
      %p267 = por %p265, %p266
      %p268 = scmp.ne.s32.totalorder %s257, %s258
      %p269 = scmp.eq.s32.totalorder %s30, 0
      %p270 = por %p268, %p269
      %p271 = scmp.ne.s32.totalorder %s257, %s258
      %p272 = scmp.eq.s32.totalorder %s31, 1
      %p273 = por %p271, %p272
      %p275 = scmp.ne.s32.totalorder %s258, %s274
      %p276 = scmp.eq.s32.totalorder %s31, 0
      %p277 = por %p275, %p276
      %s278 = ssub.s32 %s25, %s32
      %p279 = scmp.eq.s32.totalorder %s278, 0
      %s281 = sadd.s32 %s280, 1
      %s282 = scalar_select %p279, %s280, %s281
      %p285 = pneg %p279
      %p286 = scmp.eq.s32.totalorder %s25, 1
      %p287 = por %p285, %p286
      %p288 = scmp.ne.s32.totalorder %s280, %s283
      %p289 = scmp.eq.s32.totalorder %s25, 0
      %p290 = por %p288, %p289
      %p291 = scmp.ne.s32.totalorder %s280, %s283
      %p292 = scmp.eq.s32.totalorder %s30, 1
      %p293 = por %p291, %p292
      %p294 = scmp.ne.s32.totalorder %s283, %s284
      %p295 = scmp.eq.s32.totalorder %s30, 0
      %p296 = por %p294, %p295
      %p297 = scmp.ne.s32.totalorder %s283, %s284
      %p298 = scmp.eq.s32.totalorder %s31, 1
      %p299 = por %p297, %p298
      %p301 = scmp.ne.s32.totalorder %s284, %s300
      %p302 = scmp.eq.s32.totalorder %s31, 0
      %p303 = por %p301, %p302
      %s304 = ssub.s32 %s25, %s32
      %p305 = scmp.eq.s32.totalorder %s304, 0
      %s307 = sadd.s32 %s306, 1
      %s308 = scalar_select %p305, %s306, %s307
      %p311 = pneg %p305
      %p312 = scmp.eq.s32.totalorder %s25, 1
      %p313 = por %p311, %p312
      %p314 = scmp.ne.s32.totalorder %s306, %s309
      %p315 = scmp.eq.s32.totalorder %s25, 0
      %p316 = por %p314, %p315
      %p317 = scmp.ne.s32.totalorder %s306, %s309
      %p318 = scmp.eq.s32.totalorder %s30, 1
      %p319 = por %p317, %p318
      %p320 = scmp.ne.s32.totalorder %s309, %s310
      %p321 = scmp.eq.s32.totalorder %s30, 0
      %p322 = por %p320, %p321
      %p323 = scmp.ne.s32.totalorder %s309, %s310
      %p324 = scmp.eq.s32.totalorder %s31, 1
      %p325 = por %p323, %p324
      %p327 = scmp.ne.s32.totalorder %s310, %s326
      %p328 = scmp.eq.s32.totalorder %s31, 0
      %p329 = por %p327, %p328
      %s330 = ssub.s32 %s25, %s32
      %p331 = scmp.eq.s32.totalorder %s330, 0
      %s333 = sadd.s32 %s332, 1
      %s334 = scalar_select %p331, %s332, %s333
      %p337 = pneg %p331
      %p338 = scmp.eq.s32.totalorder %s25, 1
      %p339 = por %p337, %p338
      %p340 = scmp.ne.s32.totalorder %s332, %s335
      %p341 = scmp.eq.s32.totalorder %s25, 0
      %p342 = por %p340, %p341
      %p343 = scmp.ne.s32.totalorder %s332, %s335
      %p344 = scmp.eq.s32.totalorder %s30, 1
      %p345 = por %p343, %p344
      %p346 = scmp.ne.s32.totalorder %s335, %s336
      %p347 = scmp.eq.s32.totalorder %s30, 0
      %p348 = por %p346, %p347
      %p349 = scmp.ne.s32.totalorder %s335, %s336
      %p350 = scmp.eq.s32.totalorder %s31, 1
      %p351 = por %p349, %p350
      %p353 = scmp.ne.s32.totalorder %s336, %s352
      %p354 = scmp.eq.s32.totalorder %s31, 0
      %p355 = por %p353, %p354
      %s356 = ssub.s32 %s25, %s32
      %p357 = scmp.eq.s32.totalorder %s356, 0
      %s359 = sadd.s32 %s358, 1
      %s360 = scalar_select %p357, %s358, %s359
      %p363 = pneg %p357
      %p364 = scmp.eq.s32.totalorder %s25, 1
      %p365 = por %p363, %p364
      %p366 = scmp.ne.s32.totalorder %s358, %s361
      %p367 = scmp.eq.s32.totalorder %s25, 0
      %p368 = por %p366, %p367
      %p369 = scmp.ne.s32.totalorder %s358, %s361
      %p370 = scmp.eq.s32.totalorder %s30, 1
      %p371 = por %p369, %p370
      %p372 = scmp.ne.s32.totalorder %s361, %s362
      %p373 = scmp.eq.s32.totalorder %s30, 0
      %p374 = por %p372, %p373
      %p375 = scmp.ne.s32.totalorder %s361, %s362
      %p376 = scmp.eq.s32.totalorder %s31, 1
      %p377 = por %p375, %p376
      %p379 = scmp.ne.s32.totalorder %s362, %s378
      %p380 = scmp.eq.s32.totalorder %s31, 0
      %p381 = por %p379, %p380
      %s382 = ssub.s32 %s25, %s32
      %p383 = scmp.eq.s32.totalorder %s382, 0
      %s385 = sadd.s32 %s384, 1
      %s386 = scalar_select %p383, %s384, %s385
      %p389 = pneg %p383
      %p390 = scmp.eq.s32.totalorder %s25, 1
      %p391 = por %p389, %p390
      %p392 = scmp.ne.s32.totalorder %s384, %s387
      %p393 = scmp.eq.s32.totalorder %s25, 0
      %p394 = por %p392, %p393
      %p395 = scmp.ne.s32.totalorder %s384, %s387
      %p396 = scmp.eq.s32.totalorder %s30, 1
      %p397 = por %p395, %p396
      %p398 = scmp.ne.s32.totalorder %s387, %s388
      %p399 = scmp.eq.s32.totalorder %s30, 0
      %p400 = por %p398, %p399
      %p401 = scmp.ne.s32.totalorder %s387, %s388
      %p402 = scmp.eq.s32.totalorder %s31, 1
      %p403 = por %p401, %p402
      %p405 = scmp.ne.s32.totalorder %s388, %s404
      %p406 = scmp.eq.s32.totalorder %s31, 0
      %p407 = por %p405, %p406
      %s409 = sadd.s32 %s408, 1
      %p412 = scmp.eq.s32.totalorder %s25, 1
      %p413 = scmp.ne.s32.totalorder %s408, %s410
      %p414 = scmp.eq.s32.totalorder %s25, 0
      %p415 = por %p413, %p414
      %p416 = scmp.ne.s32.totalorder %s408, %s410
      %p417 = scmp.eq.s32.totalorder %s30, 1
      %p418 = por %p416, %p417
      %p419 = scmp.ne.s32.totalorder %s410, %s411
      %p420 = scmp.eq.s32.totalorder %s30, 0
      %p421 = por %p419, %p420
      %p422 = scmp.ne.s32.totalorder %s410, %s411
      %p423 = scmp.eq.s32.totalorder %s31, 1
      %p424 = por %p422, %p423
      %p426 = scmp.ne.s32.totalorder %s411, %s425
      %p427 = scmp.eq.s32.totalorder %s31, 0
      %p428 = por %p426, %p427
      %s430 = sadd.s32 %s429, 1
      %p433 = scmp.eq.s32.totalorder %s25, 1
      %p434 = scmp.ne.s32.totalorder %s429, %s431
      %p435 = scmp.eq.s32.totalorder %s25, 0
      %p436 = por %p434, %p435
      %p437 = scmp.ne.s32.totalorder %s429, %s431
      %p438 = scmp.eq.s32.totalorder %s30, 1
      %p439 = por %p437, %p438
      %p440 = scmp.ne.s32.totalorder %s431, %s432
      %p441 = scmp.eq.s32.totalorder %s30, 0
      %p442 = por %p440, %p441
      %p443 = scmp.ne.s32.totalorder %s431, %s432
      %p444 = scmp.eq.s32.totalorder %s31, 1
      %p445 = por %p443, %p444
      %p447 = scmp.ne.s32.totalorder %s432, %s446
      %p448 = scmp.eq.s32.totalorder %s31, 0
      %p449 = por %p447, %p448
      %p450 = scmp.le.s32.totalorder 1, %s25
      %p451 = scmp.lt.s32.totalorder %s25, 3
      %p452 = pnand %p450, %p451
      %p453 = pneg %p452
      // Predicated region
      $region9: #{tpu_custom_call.1} parent=5 // pred_check
        _
      $region10: #{tpu_custom_call.1} parent=5 // pred_check_branch
        %455 = sbr.rel (%p452) target = $region12
      $region11: #{tpu_custom_call.1} parent=5 // pred_region
        %s456 = ssub.s32 %s25, 1
        // Predicated region
        $region13: #{tpu_custom_call.1} parent=11 // pred_check
          %p457 = pneg %p46
        $region14: #{tpu_custom_call.1} parent=11 // pred_check_branch
          %459 = sbr.rel (%p457) target = $region16
        $region15: #{tpu_custom_call.1} parent=11 // pred_region
          _
        $region16: #{tpu_custom_call.1} parent=11 // pred_fallthru
          _
        // Predicated region
        $region17: #{tpu_custom_call.1} parent=11 // pred_check
          %p460 = pneg %p67
        $region18: #{tpu_custom_call.1} parent=11 // pred_check_branch
          %462 = sbr.rel (%p460) target = $region20
        $region19: #{tpu_custom_call.1} parent=11 // pred_region
          _
        $region20: #{tpu_custom_call.1} parent=11 // pred_fallthru
          _
        // Predicated region
        $region21: #{tpu_custom_call.1} parent=11 // pred_check
          %p463 = pneg %p88
        $region22: #{tpu_custom_call.1} parent=11 // pred_check_branch
          %465 = sbr.rel (%p463) target = $region24
        $region23: #{tpu_custom_call.1} parent=11 // pred_region
          _
        $region24: #{tpu_custom_call.1} parent=11 // pred_fallthru
          _
      $region12: #{tpu_custom_call.1} parent=5 // pred_fallthru
        _
      %p466 = scmp.lt.s32.totalorder %s25, 2
      // Predicated region
      $region25: #{tpu_custom_call.1} parent=5 // pred_check
        %p467 = pneg %p466
      $region26: #{tpu_custom_call.1} parent=5 // pred_check_branch
        %469 = sbr.rel (%p467) target = $region28
      $region27: #{tpu_custom_call.1} parent=5 // pred_region
        // Predicated region
        $region29: #{tpu_custom_call.1} parent=27 // pred_check
          %p470 = pneg %p108
        $region30: #{tpu_custom_call.1} parent=27 // pred_check_branch
          %472 = sbr.rel (%p470) target = $region32
        $region31: #{tpu_custom_call.1} parent=27 // pred_region
          %p473 = scmp.lt.s32.totalorder %s25, 1
          %s474 = scalar_select %p473, %s25, 1
          %s475 = smul.addr %s474, 4
          %s476 = smul.addr %s475, 4
          %s477 = scalar_lea.vmem %s3, %s476
        $region32: #{tpu_custom_call.1} parent=27 // pred_fallthru
          _
        // Predicated region
        $region33: #{tpu_custom_call.1} parent=27 // pred_check
          %p478 = pneg %p134
        $region34: #{tpu_custom_call.1} parent=27 // pred_check_branch
          %480 = sbr.rel (%p478) target = $region36
        $region35: #{tpu_custom_call.1} parent=27 // pred_region
          %p481 = scmp.lt.s32.totalorder %s25, 1
          %s482 = scalar_select %p481, %s25, 1
          %s483 = scalar_lea.vmem %s4, %s482
        $region36: #{tpu_custom_call.1} parent=27 // pred_fallthru
          _
        // Predicated region
        $region37: #{tpu_custom_call.1} parent=27 // pred_check
          %p484 = pneg %p160
        $region38: #{tpu_custom_call.1} parent=27 // pred_check_branch
          %486 = sbr.rel (%p484) target = $region40
        $region39: #{tpu_custom_call.1} parent=27 // pred_region
          %p487 = scmp.lt.s32.totalorder %s25, 1
          %s488 = scalar_select %p487, %s25, 1
          %s489 = smul.addr %s488, 4
          %s490 = smul.addr %s489, 4
          %s491 = scalar_lea.vmem %s5, %s490
        $region40: #{tpu_custom_call.1} parent=27 // pred_fallthru
          _
        // Predicated region
        $region41: #{tpu_custom_call.1} parent=27 // pred_check
          %p492 = pneg %p186
        $region42: #{tpu_custom_call.1} parent=27 // pred_check_branch
          %494 = sbr.rel (%p492) target = $region44
        $region43: #{tpu_custom_call.1} parent=27 // pred_region
          %p495 = scmp.lt.s32.totalorder %s25, 1
          %s496 = scalar_select %p495, %s25, 1
          %s497 = scalar_lea.vmem %s6, %s496
        $region44: #{tpu_custom_call.1} parent=27 // pred_fallthru
          _
        // Predicated region
        $region45: #{tpu_custom_call.1} parent=27 // pred_check
          %p498 = pneg %p212
        $region46: #{tpu_custom_call.1} parent=27 // pred_check_branch
          %500 = sbr.rel (%p498) target = $region48
        $region47: #{tpu_custom_call.1} parent=27 // pred_region
          %p501 = scmp.lt.s32.totalorder %s25, 1
          %s502 = scalar_select %p501, %s25, 1
          %s503 = scalar_lea.vmem %s7, %s502
        $region48: #{tpu_custom_call.1} parent=27 // pred_fallthru
          _
        // Predicated region
        $region49: #{tpu_custom_call.1} parent=27 // pred_check
          %p504 = pneg %p238
        $region50: #{tpu_custom_call.1} parent=27 // pred_check_branch
          %506 = sbr.rel (%p504) target = $region52
        $region51: #{tpu_custom_call.1} parent=27 // pred_region
          %p507 = scmp.lt.s32.totalorder %s25, 1
          %s508 = scalar_select %p507, %s25, 1
          %s509 = scalar_lea.vmem %s8, %s508
        $region52: #{tpu_custom_call.1} parent=27 // pred_fallthru
          _
        // Predicated region
        $region53: #{tpu_custom_call.1} parent=27 // pred_check
          %p510 = pneg %p264
        $region54: #{tpu_custom_call.1} parent=27 // pred_check_branch
          %512 = sbr.rel (%p510) target = $region56
        $region55: #{tpu_custom_call.1} parent=27 // pred_region
          %p513 = scmp.lt.s32.totalorder %s25, 1
          %s514 = scalar_select %p513, %s25, 1
          %s515 = smul.addr %s514, 4
          %s516 = smul.addr %s515, 4
          %s517 = scalar_lea.vmem %s9, %s516
        $region56: #{tpu_custom_call.1} parent=27 // pred_fallthru
          _
        // Predicated region
        $region57: #{tpu_custom_call.1} parent=27 // pred_check
          %p518 = pneg %p290
        $region58: #{tpu_custom_call.1} parent=27 // pred_check_branch
          %520 = sbr.rel (%p518) target = $region60
        $region59: #{tpu_custom_call.1} parent=27 // pred_region
          %p521 = scmp.lt.s32.totalorder %s25, 1
          %s522 = scalar_select %p521, %s25, 1
          %s523 = scalar_lea.vmem %s10, %s522
        $region60: #{tpu_custom_call.1} parent=27 // pred_fallthru
          _
        // Predicated region
        $region61: #{tpu_custom_call.1} parent=27 // pred_check
          %p524 = pneg %p316
        $region62: #{tpu_custom_call.1} parent=27 // pred_check_branch
          %526 = sbr.rel (%p524) target = $region64
        $region63: #{tpu_custom_call.1} parent=27 // pred_region
          %p527 = scmp.lt.s32.totalorder %s25, 1
          %s528 = scalar_select %p527, %s25, 1
          %s529 = smul.addr %s528, 16
          %s530 = smul.addr %s529, 4
          %s531 = scalar_lea.vmem %s11, %s530
        $region64: #{tpu_custom_call.1} parent=27 // pred_fallthru
          _
        // Predicated region
        $region65: #{tpu_custom_call.1} parent=27 // pred_check
          %p532 = pneg %p342
        $region66: #{tpu_custom_call.1} parent=27 // pred_check_branch
          %534 = sbr.rel (%p532) target = $region68
        $region67: #{tpu_custom_call.1} parent=27 // pred_region
          %p535 = scmp.lt.s32.totalorder %s25, 1
          %s536 = scalar_select %p535, %s25, 1
          %s537 = scalar_lea.vmem %s12, %s536
        $region68: #{tpu_custom_call.1} parent=27 // pred_fallthru
          _
        // Predicated region
        $region69: #{tpu_custom_call.1} parent=27 // pred_check
          %p538 = pneg %p368
        $region70: #{tpu_custom_call.1} parent=27 // pred_check_branch
          %540 = sbr.rel (%p538) target = $region72
        $region71: #{tpu_custom_call.1} parent=27 // pred_region
          %p541 = scmp.lt.s32.totalorder %s25, 1
          %s542 = scalar_select %p541, %s25, 1
          %s543 = scalar_lea.vmem %s13, %s542
        $region72: #{tpu_custom_call.1} parent=27 // pred_fallthru
          _
        // Predicated region
        $region73: #{tpu_custom_call.1} parent=27 // pred_check
          %p544 = pneg %p394
        $region74: #{tpu_custom_call.1} parent=27 // pred_check_branch
          %546 = sbr.rel (%p544) target = $region76
        $region75: #{tpu_custom_call.1} parent=27 // pred_region
          %p547 = scmp.lt.s32.totalorder %s25, 1
          %s548 = scalar_select %p547, %s25, 1
          %s549 = scalar_lea.vmem %s14, %s548
        $region76: #{tpu_custom_call.1} parent=27 // pred_fallthru
          _
      $region28: #{tpu_custom_call.1} parent=5 // pred_fallthru
        _
      %p550 = scmp.le.s32.totalorder 1, %s25
      %p551 = scmp.lt.s32.totalorder %s25, 3
      %p552 = pnand %p550, %p551
      %p553 = pneg %p552
      // Predicated region
      $region77: #{tpu_custom_call.1} parent=5 // pred_check
        _
      $region78: #{tpu_custom_call.1} parent=5 // pred_check_branch
        %555 = sbr.rel (%p552) target = $region80
      $region79: #{tpu_custom_call.1} parent=5 // pred_region
        %s556 = ssub.s32 %s25, 1
        %p557 = pneg %p46
        %p558 = pneg %p43
        %p559 = pneg %p67
        %p560 = pneg %p64
        %p561 = pneg %p88
        %p562 = pneg %p85
        %p563 = scmp.lt.s32.totalorder %s30, 1
        %s564 = scalar_select %p563, %s30, 1
        %s565 = smul.addr %s564, 4
        %s566 = smul.addr %s565, 4
        %s567 = scalar_lea.vmem %s3, %s566
        %p568 = pneg %p114
        %p569 = pneg %p111
        %p570 = scmp.lt.s32.totalorder %s30, 1
        %s571 = scalar_select %p570, %s30, 1
        %s572 = scalar_lea.vmem %s4, %s571
        %p573 = pneg %p140
        %p574 = pneg %p137
        %p575 = scmp.lt.s32.totalorder %s30, 1
        %s576 = scalar_select %p575, %s30, 1
        %s577 = smul.addr %s576, 4
        %s578 = smul.addr %s577, 4
        %s579 = scalar_lea.vmem %s5, %s578
        %p580 = pneg %p166
        %p581 = pneg %p163
        %p582 = scmp.lt.s32.totalorder %s30, 1
        %s583 = scalar_select %p582, %s30, 1
        %s584 = scalar_lea.vmem %s6, %s583
        %p585 = pneg %p192
        %p586 = pneg %p189
        %p587 = scmp.lt.s32.totalorder %s30, 1
        %s588 = scalar_select %p587, %s30, 1
        %s589 = scalar_lea.vmem %s7, %s588
        %p590 = pneg %p218
        %p591 = pneg %p215
        %p592 = scmp.lt.s32.totalorder %s30, 1
        %s593 = scalar_select %p592, %s30, 1
        %s594 = scalar_lea.vmem %s8, %s593
        %p595 = pneg %p244
        %p596 = pneg %p241
        %p597 = scmp.lt.s32.totalorder %s30, 1
        %s598 = scalar_select %p597, %s30, 1
        %s599 = smul.addr %s598, 4
        %s600 = smul.addr %s599, 4
        %s601 = scalar_lea.vmem %s9, %s600
        %p602 = pneg %p270
        %p603 = pneg %p267
        %p604 = scmp.lt.s32.totalorder %s30, 1
        %s605 = scalar_select %p604, %s30, 1
        %s606 = scalar_lea.vmem %s10, %s605
        %p607 = pneg %p296
        %p608 = pneg %p293
        %p609 = scmp.lt.s32.totalorder %s30, 1
        %s610 = scalar_select %p609, %s30, 1
        %s611 = smul.addr %s610, 16
        %s612 = smul.addr %s611, 4
        %s613 = scalar_lea.vmem %s11, %s612
        %p614 = pneg %p322
        %p615 = pneg %p319
        %p616 = scmp.lt.s32.totalorder %s30, 1
        %s617 = scalar_select %p616, %s30, 1
        %s618 = scalar_lea.vmem %s12, %s617
        %p619 = pneg %p348
        %p620 = pneg %p345
        %p621 = scmp.lt.s32.totalorder %s30, 1
        %s622 = scalar_select %p621, %s30, 1
        %s623 = scalar_lea.vmem %s13, %s622
        %p624 = pneg %p374
        %p625 = pneg %p371
        %p626 = scmp.lt.s32.totalorder %s30, 1
        %s627 = scalar_select %p626, %s30, 1
        %s628 = scalar_lea.vmem %s14, %s627
        %p629 = pneg %p400
        %p630 = pneg %p397
        %p631 = pneg %p421
        %p632 = pneg %p418
        %p633 = pneg %p442
        %p634 = pneg %p439
        %p635 = scmp.lt.s32.totalorder %s30, 1
        %s636 = scalar_select %p635, %s30, 1
        %s637 = smul.addr %s636, 4
        %s638 = smul.addr %s637, 4
        %s639 = scalar_lea.vmem %s3, %s638
        %p640 = scmp.lt.s32.totalorder %s30, 1
        %s641 = scalar_select %p640, %s30, 1
        %s642 = scalar_lea.vmem %s4, %s641
        %p643 = scmp.lt.s32.totalorder %s30, 1
        %s644 = scalar_select %p643, %s30, 1
        %s645 = smul.addr %s644, 4
        %s646 = smul.addr %s645, 4
        %s647 = scalar_lea.vmem %s5, %s646
        %p648 = scmp.lt.s32.totalorder %s30, 1
        %s649 = scalar_select %p648, %s30, 1
        %s650 = scalar_lea.vmem %s6, %s649
        %p651 = scmp.lt.s32.totalorder %s30, 1
        %s652 = scalar_select %p651, %s30, 1
        %s653 = scalar_lea.vmem %s7, %s652
        %p654 = scmp.lt.s32.totalorder %s30, 1
        %s655 = scalar_select %p654, %s30, 1
        %s656 = scalar_lea.vmem %s8, %s655
        %p657 = scmp.lt.s32.totalorder %s30, 1
        %s658 = scalar_select %p657, %s30, 1
        %s659 = smul.addr %s658, 4
        %s660 = smul.addr %s659, 4
        %s661 = scalar_lea.vmem %s9, %s660
        %p662 = scmp.lt.s32.totalorder %s30, 1
        %s663 = scalar_select %p662, %s30, 1
        %s664 = scalar_lea.vmem %s10, %s663
        %p665 = scmp.lt.s32.totalorder %s30, 1
        %s666 = scalar_select %p665, %s30, 1
        %s667 = smul.addr %s666, 16
        %s668 = smul.addr %s667, 4
        %s669 = scalar_lea.vmem %s11, %s668
        %p670 = scmp.lt.s32.totalorder %s30, 1
        %s671 = scalar_select %p670, %s30, 1
        %s672 = scalar_lea.vmem %s12, %s671
        %p673 = scmp.lt.s32.totalorder %s30, 1
        %s674 = scalar_select %p673, %s30, 1
        %s675 = scalar_lea.vmem %s13, %s674
        %p676 = scmp.lt.s32.totalorder %s30, 1
        %s677 = scalar_select %p676, %s30, 1
        %s678 = scalar_lea.vmem %s14, %s677
        %p680 = scmp.eq.s32.totalorder %s30, 0
        // Predicated region
        $region81: #{tpu_custom_call.1} parent=79 // pred_check
          %p681 = pneg %p680
        $region82: #{tpu_custom_call.1} parent=79 // pred_check_branch
          %683 = sbr.rel (%p681) target = $region84
        $region83: #{tpu_custom_call.1} parent=79 // pred_region
          %v684 = vld [vmem:[%s0] sm:$0xff]
          %v685 = vld [vmem:[%s0 + $0x8] sm:$0xff]
          %vm686 = vcmask 261120
          %687 = vst.msk [vmem:[#allocation2] sm:$0xff] %vm686, %v684
          %688 = vst.msk [vmem:[#allocation2 + $0x8] sm:$0xff] %vm686, %v685
        $region84: #{tpu_custom_call.1} parent=79 // pred_fallthru
          _
        %v689 = vld [vmem:[#allocation2] sm:$0xff]
        %v690 = vld [vmem:[#allocation2 + $0x8] sm:$0xff]
        %v691 = vld [vmem:[%s2] sm:$0xff]
        %v692 = vld [vmem:[%s2 + $0x8] sm:$0xff]
        %v693 = vld [vmem:[%s2 + $0x10] sm:$0xff]
        %v694 = vld [vmem:[%s2 + $0x18] sm:$0xff]
        %v695 = vld [vmem:[%s2 + $0x20] sm:$0xff]
        %v696 = vld [vmem:[%s2 + $0x28] sm:$0xff]
        %v697 = vld [vmem:[%s2 + $0x30] sm:$0xff]
        %v698 = vld [vmem:[%s2 + $0x38] sm:$0xff]
        %v699 = vpack.c.bf16 %v690, %v689
        %v700 = vld [vmem:[%s639] sm:$0xf]
        %v701 = vld [vmem:[%s639 + $0x4] sm:$0xf]
        %v702 = vld [vmem:[%s639 + $0x8] sm:$0xf]
        %v703 = vld [vmem:[%s639 + $0xc] sm:$0xf]
        %v704 = vld [vmem:[%s642] sm:$0x1]
        %v706 = vlaneseq
        %v707 = vshrl.u32 %v706, 7
        %v708 = vsub.s32 0, %v707
        %v709 = vrot.slane %v704, %v708
        %v715 = vunpack.c.l.b16 %v700
        %v716 = vunpack.c.l.b16 %v701
        %v717 = vunpack.c.l.b16 %v702
        %v718 = vunpack.c.l.b16 %v703
        %v719 = vpack.c.b16 %v716, %v715
        %v720 = vpack.c.b16 %v718, %v717
        %vm723 = vcmask 261120
        %v725 = vsel %vm723, %v699, 0
        %727 = vmatprep.subr.bf16.mxu0 0
        %728 = vmatpush1.bf16.msra.mxu0 0
        %729 = vmatprep.subr.bf16.mxu0 0
        %730 = vmatpush1.bf16.msra.mxu0 0
        %731 = vmatprep.subr.bf16.mxu0 0
        %732 = vmatpush1.bf16.msra.mxu0 0
        %733 = vmatprep.subr.bf16.mxu0 0
        %734 = vmatpush1.bf16.msra.mxu0 0
        %735 = vmatprep.subr.bf16.mxu0 0
        %736 = vmatpush1.bf16.msra.mxu0 0
        %737 = vmatprep.subr.bf16.mxu0 0
        %738 = vmatpush1.bf16.msra.mxu0 0
        %739 = vmatprep.subr.bf16.mxu0 0
        %740 = vmatpush1.bf16.msra.mxu0 %v720
        %741 = vmatprep.subr.bf16.mxu0 0
        %742 = vmatpush1.bf16.msra.mxu0 %v719
        %743 = vmatprep.subr.bf16.mxu0 0
        %744 = vmatpush2.bf16.msra.mxu0 0
        %745 = vmatprep.subr.bf16.mxu0 0
        %746 = vmatpush2.bf16.msra.mxu0 0
        %747 = vmatprep.subr.bf16.mxu0 0
        %748 = vmatpush2.bf16.msra.mxu0 0
        %749 = vmatprep.subr.bf16.mxu0 0
        %750 = vmatpush2.bf16.msra.mxu0 0
        %751 = vmatprep.subr.bf16.mxu0 0
        %752 = vmatpush2.bf16.msra.mxu0 0
        %753 = vmatprep.subr.bf16.mxu0 0
        %754 = vmatpush2.bf16.msra.mxu0 0
        %755 = vmatprep.subr.bf16.mxu0 0
        %756 = vmatpush2.bf16.msra.mxu0 0
        %757 = vmatprep.subr.bf16.mxu0 0
        %758 = vmatpush2.bf16.msra.mxu0 0
        %759 = vmatprep.mubr.bf16.mxu0 0
        %760 = vmatmul.mubr.bf16.gmra.mxu0 %v725
        %v761 = vpop.f32.mrf.mxu0
        %v762 = vadd.f32 %v709, %v761
        %v763 = vpop.f32.mrf.mxu0
        %v764 = vpop.f32.mrf.mxu0
        %v765 = vadd.f32 %v709, %v764
        %v766 = vpop.f32.mrf.mxu0
        %767 = vdwg.mxu0
        %v768 = vld [vmem:[%s1] sm:$0x1]
        %v769 = vmul.f32 %v762, %v691
        %v770 = vmul.f32 %v762, %v692
        %v771 = vmul.f32 %v762, %v693
        %v772 = vmul.f32 %v762, %v694
        %v773 = vmul.f32 %v762, %v695
        %v774 = vmul.f32 %v762, %v696
        %v775 = vmul.f32 %v762, %v697
        %v776 = vmul.f32 %v762, %v698
        %v778 = vlaneseq
        %v779 = vshrl.u32 %v778, 7
        %v780 = vsub.s32 0, %v779
        %v781 = vrot.slane %v768, %v780
        %784 = vrot.lane.b32.xlu0 %v762, 96
        %v785 = vpop.permute.xlu0 %784
        %v787 = vsel %vm723, %v769, 0
        %v790 = vsel %vm723, %v770, 0
        %v793 = vsel %vm723, %v771, 0
        %v796 = vsel %vm723, %v772, 0
        %v799 = vsel %vm723, %v773, 0
        %v802 = vsel %vm723, %v774, 0
        %v805 = vsel %vm723, %v775, 0
        %v808 = vsel %vm723, %v776, 0
        %v810 = vsel %vm723, %v785, 0
        %812 = vmatprep.subr.mxu0 0.0
        %813 = vmatpush1.xpose.msra.mxu0 0.0
        %814 = vmatprep.subr.mxu0 0.0
        %815 = vmatpush1.xpose.msra.mxu0 0.0
        %816 = vmatprep.subr.mxu0 0.0
        %817 = vmatpush1.xpose.msra.mxu0 0.0
        %818 = vmatprep.subr.mxu0 0.0
        %819 = vmatpush1.xpose.msra.mxu0 0.0
        %820 = vmatprep.subr.mxu0 0.0
        %821 = vmatpush1.xpose.msra.mxu0 0.0
        %822 = vmatprep.subr.mxu0 0.0
        %823 = vmatpush1.xpose.msra.mxu0 0.0
        %824 = vmatprep.subr.mxu0 0.0
        %825 = vmatpush1.xpose.msra.mxu0 0.0
        %826 = vmatprep.subr.mxu0 0.0
        %827 = vmatpush1.xpose.msra.mxu0 0.0
        %828 = vmatprep.subr.mxu0 0.0
        %829 = vmatpush1.xpose.msra.mxu0 0.0
        %830 = vmatprep.subr.mxu0 0.0
        %831 = vmatpush1.xpose.msra.mxu0 0.0
        %832 = vmatprep.subr.mxu0 0.0
        %833 = vmatpush1.xpose.msra.mxu0 0.0
        %834 = vmatprep.subr.mxu0 0.0
        %835 = vmatpush1.xpose.msra.mxu0 0.0
        %836 = vmatprep.subr.mxu0 0.0
        %837 = vmatpush1.xpose.msra.mxu0 0.0
        %838 = vmatprep.subr.mxu0 0.0
        %839 = vmatpush1.xpose.msra.mxu0 0.0
        %840 = vmatprep.subr.mxu0 0.0
        %841 = vmatpush1.xpose.msra.mxu0 0.0
        %842 = vmatprep.subr.mxu0 0.0
        %843 = vmatpush1.xpose.msra.mxu0 %v810
        %844 = vmatprep.subr.mxu0 0.0
        %845 = vmatpush2.xpose.msra.mxu0 0.0
        %846 = vmatprep.subr.mxu0 0.0
        %847 = vmatpush2.xpose.msra.mxu0 0.0
        %848 = vmatprep.subr.mxu0 0.0
        %849 = vmatpush2.xpose.msra.mxu0 0.0
        %850 = vmatprep.subr.mxu0 0.0
        %851 = vmatpush2.xpose.msra.mxu0 0.0
        %852 = vmatprep.subr.mxu0 0.0
        %853 = vmatpush2.xpose.msra.mxu0 0.0
        %854 = vmatprep.subr.mxu0 0.0
        %855 = vmatpush2.xpose.msra.mxu0 0.0
        %856 = vmatprep.subr.mxu0 0.0
        %857 = vmatpush2.xpose.msra.mxu0 0.0
        %858 = vmatprep.subr.mxu0 0.0
        %859 = vmatpush2.xpose.msra.mxu0 0.0
        %860 = vmatprep.subr.mxu0 0.0
        %861 = vmatpush2.xpose.msra.mxu0 0.0
        %862 = vmatprep.subr.mxu0 0.0
        %863 = vmatpush2.xpose.msra.mxu0 0.0
        %864 = vmatprep.subr.mxu0 0.0
        %865 = vmatpush2.xpose.msra.mxu0 0.0
        %866 = vmatprep.subr.mxu0 0.0
        %867 = vmatpush2.xpose.msra.mxu0 0.0
        %868 = vmatprep.subr.mxu0 0.0
        %869 = vmatpush2.xpose.msra.mxu0 0.0
        %870 = vmatprep.subr.mxu0 0.0
        %871 = vmatpush2.xpose.msra.mxu0 0.0
        %872 = vmatprep.subr.mxu0 0.0
        %873 = vmatpush2.xpose.msra.mxu0 0.0
        %874 = vmatprep.subr.mxu0 0.0
        %875 = vmatpush2.xpose.msra.mxu0 0.0
        %876 = vmatprep.mubr.f32.mxu0 0.0
        %877 = vmatmul.mubr.f32.gmra.mxu0 %v787
        %v878 = vpop.f32.mrf.mxu0
        %v879 = vadd.f32 %v781, %v878
        %v880 = vpop.f32.mrf.mxu0
        %881 = vmatprep.mubr.f32.mxu0 0.0
        %882 = vmatmul.mubr.f32.gmra.mxu0 %v790
        %v883 = vpop.f32.mrf.mxu0
        %v884 = vadd.f32 %v781, %v883
        %v885 = vpop.f32.mrf.mxu0
        %886 = vmatprep.mubr.f32.mxu0 0.0
        %887 = vmatmul.mubr.f32.gmra.mxu0 %v793
        %v888 = vpop.f32.mrf.mxu0
        %v889 = vadd.f32 %v781, %v888
        %v890 = vpop.f32.mrf.mxu0
        %891 = vmatprep.mubr.f32.mxu0 0.0
        %892 = vmatmul.mubr.f32.gmra.mxu0 %v796
        %v893 = vpop.f32.mrf.mxu0
        %v894 = vadd.f32 %v781, %v893
        %v895 = vpop.f32.mrf.mxu0
        %896 = vmatprep.mubr.f32.mxu0 0.0
        %897 = vmatmul.mubr.f32.gmra.mxu0 %v799
        %v898 = vpop.f32.mrf.mxu0
        %v899 = vadd.f32 %v781, %v898
        %v900 = vpop.f32.mrf.mxu0
        %901 = vmatprep.mubr.f32.mxu0 0.0
        %902 = vmatmul.mubr.f32.gmra.mxu0 %v802
        %v903 = vpop.f32.mrf.mxu0
        %v904 = vadd.f32 %v781, %v903
        %v905 = vpop.f32.mrf.mxu0
        %906 = vmatprep.mubr.f32.mxu0 0.0
        %907 = vmatmul.mubr.f32.gmra.mxu0 %v805
        %v908 = vpop.f32.mrf.mxu0
        %v909 = vadd.f32 %v781, %v908
        %v910 = vpop.f32.mrf.mxu0
        %911 = vmatprep.mubr.f32.mxu0 0.0
        %912 = vmatmul.mubr.f32.gmra.mxu0 %v808
        %v913 = vpop.f32.mrf.mxu0
        %v914 = vadd.f32 %v781, %v913
        %v915 = vpop.f32.mrf.mxu0
        %916 = vdwg.mxu0
        %vm917 = vcmask 64512
        %v918 = vsel %vm917, %v879, -inf
        %919 = vmax.xlane.f32.xlu0 %v918
        %v920 = vpop.xlane.xlu0 %919
        %v921 = vsel %vm917, %v884, -inf
        %922 = vmax.xlane.f32.xlu0 %v921
        %v923 = vpop.xlane.xlu0 %922
        %v924 = vsel %vm917, %v889, -inf
        %925 = vmax.xlane.f32.xlu0 %v924
        %v926 = vpop.xlane.xlu0 %925
        %v927 = vsel %vm917, %v894, -inf
        %928 = vmax.xlane.f32.xlu0 %v927
        %v929 = vpop.xlane.xlu0 %928
        %v930 = vsel %vm917, %v899, -inf
        %931 = vmax.xlane.f32.xlu0 %v930
        %v932 = vpop.xlane.xlu0 %931
        %v933 = vsel %vm917, %v904, -inf
        %934 = vmax.xlane.f32.xlu0 %v933
        %v935 = vpop.xlane.xlu0 %934
        %v936 = vsel %vm917, %v909, -inf
        %937 = vmax.xlane.f32.xlu0 %v936
        %v938 = vpop.xlane.xlu0 %937
        %v939 = vsel %vm917, %v914, -inf
        %940 = vmax.xlane.f32.xlu0 %v939
        %v941 = vpop.xlane.xlu0 %940
        %v942 = vsub.f32 %v879, %v920
        %v943 = vsub.f32 %v884, %v923
        %v944 = vsub.f32 %v889, %v926
        %v945 = vsub.f32 %v894, %v929
        %v946 = vsub.f32 %v899, %v932
        %v947 = vsub.f32 %v904, %v935
        %v948 = vsub.f32 %v909, %v938
        %v949 = vsub.f32 %v914, %v941
        %v950 = vmul.f32 %v942, 1.442695
        %v951 = vpow.pop %v950
        %v952 = vmul.f32 %v943, 1.442695
        %v953 = vpow.pop %v952
        %v954 = vmul.f32 %v944, 1.442695
        %v955 = vpow.pop %v954
        %v956 = vmul.f32 %v945, 1.442695
        %v957 = vpow.pop %v956
        %v958 = vmul.f32 %v946, 1.442695
        %v959 = vpow.pop %v958
        %v960 = vmul.f32 %v947, 1.442695
        %v961 = vpow.pop %v960
        %v962 = vmul.f32 %v948, 1.442695
        %v963 = vpow.pop %v962
        %v964 = vmul.f32 %v949, 1.442695
        %v965 = vpow.pop %v964
        %v966 = vsel %vm917, %v951, 0.0
        %967 = vadd.xlane.f32.xlu0 %v966
        %v968 = vpop.xlane.xlu0 %967
        %v969 = vsel %vm917, %v953, 0.0
        %970 = vadd.xlane.f32.xlu0 %v969
        %v971 = vpop.xlane.xlu0 %970
        %v972 = vsel %vm917, %v955, 0.0
        %973 = vadd.xlane.f32.xlu0 %v972
        %v974 = vpop.xlane.xlu0 %973
        %v975 = vsel %vm917, %v957, 0.0
        %976 = vadd.xlane.f32.xlu0 %v975
        %v977 = vpop.xlane.xlu0 %976
        %v978 = vsel %vm917, %v959, 0.0
        %979 = vadd.xlane.f32.xlu0 %v978
        %v980 = vpop.xlane.xlu0 %979
        %v981 = vsel %vm917, %v961, 0.0
        %982 = vadd.xlane.f32.xlu0 %v981
        %v983 = vpop.xlane.xlu0 %982
        %v984 = vsel %vm917, %v963, 0.0
        %985 = vadd.xlane.f32.xlu0 %v984
        %v986 = vpop.xlane.xlu0 %985
        %v987 = vsel %vm917, %v965, 0.0
        %988 = vadd.xlane.f32.xlu0 %v987
        %v989 = vpop.xlane.xlu0 %988
        %v990 = vrcp.pop %v968
        %v991 = vrcp.pop %v971
        %v992 = vrcp.pop %v974
        %v993 = vrcp.pop %v977
        %v994 = vrcp.pop %v980
        %v995 = vrcp.pop %v983
        %v996 = vrcp.pop %v986
        %v997 = vrcp.pop %v989
        %v998 = vmul.f32 %v951, %v990
        %v999 = vmul.f32 %v953, %v991
        %v1000 = vmul.f32 %v955, %v992
        %v1001 = vmul.f32 %v957, %v993
        %v1002 = vmul.f32 %v959, %v994
        %v1003 = vmul.f32 %v961, %v995
        %v1004 = vmul.f32 %v963, %v996
        %v1005 = vmul.f32 %v965, %v997
        %1006 = vrot.lane.b32.xlu0 %v762, 64
        %v1007 = vpop.permute.xlu0 %1006
        %v1010 = vsel %vm917, %v998, 0
        %v1013 = vsel %vm917, %v999, 0
        %v1016 = vsel %vm917, %v1000, 0
        %v1019 = vsel %vm917, %v1001, 0
        %v1022 = vsel %vm917, %v1002, 0
        %v1025 = vsel %vm917, %v1003, 0
        %v1028 = vsel %vm917, %v1004, 0
        %v1031 = vsel %vm917, %v1005, 0
        %1033 = vmatprep.subr.mxu0 0.0
        %1034 = vmatpush1.msra.mxu0 0.0
        %1035 = vmatprep.subr.mxu0 0.0
        %1036 = vmatpush1.msra.mxu0 0.0
        %1037 = vmatprep.subr.mxu0 0.0
        %1038 = vmatpush1.msra.mxu0 0.0
        %1039 = vmatprep.subr.mxu0 0.0
        %1040 = vmatpush1.msra.mxu0 0.0
        %1041 = vmatprep.subr.mxu0 0.0
        %1042 = vmatpush1.msra.mxu0 0.0
        %1043 = vmatprep.subr.mxu0 0.0
        %1044 = vmatpush1.msra.mxu0 0.0
        %1045 = vmatprep.subr.mxu0 0.0
        %1046 = vmatpush1.msra.mxu0 0.0
        %1047 = vmatprep.subr.mxu0 0.0
        %1048 = vmatpush1.msra.mxu0 0.0
        %1049 = vmatprep.subr.mxu0 0.0
        %1050 = vmatpush1.msra.mxu0 0.0
        %1051 = vmatprep.subr.mxu0 0.0
        %1052 = vmatpush1.msra.mxu0 0.0
        %1053 = vmatprep.subr.mxu0 0.0
        %1054 = vmatpush1.msra.mxu0 0.0
        %1055 = vmatprep.subr.mxu0 0.0
        %1056 = vmatpush1.msra.mxu0 0.0
        %1057 = vmatprep.subr.mxu0 0.0
        %1058 = vmatpush1.msra.mxu0 0.0
        %1059 = vmatprep.subr.mxu0 0.0
        %1060 = vmatpush1.msra.mxu0 0.0
        %1061 = vmatprep.subr.mxu0 0.0
        %1062 = vmatpush1.msra.mxu0 0.0
        %1063 = vmatprep.subr.mxu0 0.0
        %1064 = vmatpush1.msra.mxu0 %v1007
        %1065 = vmatprep.subr.mxu0 0.0
        %1066 = vmatpush2.msra.mxu0 0.0
        %1067 = vmatprep.subr.mxu0 0.0
        %1068 = vmatpush2.msra.mxu0 0.0
        %1069 = vmatprep.subr.mxu0 0.0
        %1070 = vmatpush2.msra.mxu0 0.0
        %1071 = vmatprep.subr.mxu0 0.0
        %1072 = vmatpush2.msra.mxu0 0.0
        %1073 = vmatprep.subr.mxu0 0.0
        %1074 = vmatpush2.msra.mxu0 0.0
        %1075 = vmatprep.subr.mxu0 0.0
        %1076 = vmatpush2.msra.mxu0 0.0
        %1077 = vmatprep.subr.mxu0 0.0
        %1078 = vmatpush2.msra.mxu0 0.0
        %1079 = vmatprep.subr.mxu0 0.0
        %1080 = vmatpush2.msra.mxu0 0.0
        %1081 = vmatprep.subr.mxu0 0.0
        %1082 = vmatpush2.msra.mxu0 0.0
        %1083 = vmatprep.subr.mxu0 0.0
        %1084 = vmatpush2.msra.mxu0 0.0
        %1085 = vmatprep.subr.mxu0 0.0
        %1086 = vmatpush2.msra.mxu0 0.0
        %1087 = vmatprep.subr.mxu0 0.0
        %1088 = vmatpush2.msra.mxu0 0.0
        %1089 = vmatprep.subr.mxu0 0.0
        %1090 = vmatpush2.msra.mxu0 0.0
        %1091 = vmatprep.subr.mxu0 0.0
        %1092 = vmatpush2.msra.mxu0 0.0
        %1093 = vmatprep.subr.mxu0 0.0
        %1094 = vmatpush2.msra.mxu0 0.0
        %1095 = vmatprep.subr.mxu0 0.0
        %1096 = vmatpush2.msra.mxu0 0.0
        %1097 = vmatprep.mubr.f32.mxu0 0.0
        %1098 = vmatmul.mubr.f32.gmra.mxu0 %v1010
        %v1099 = vpop.f32.mrf.mxu0
        %v1100 = vadd.f32 0.0, %v1099
        %v1101 = vpop.f32.mrf.mxu0
        %1102 = vmatprep.mubr.f32.mxu0 0.0
        %1103 = vmatmul.mubr.f32.gmra.mxu0 %v1013
        %v1104 = vpop.f32.mrf.mxu0
        %v1105 = vadd.f32 0.0, %v1104
        %v1106 = vpop.f32.mrf.mxu0
        %1107 = vmatprep.mubr.f32.mxu0 0.0
        %1108 = vmatmul.mubr.f32.gmra.mxu0 %v1016
        %v1109 = vpop.f32.mrf.mxu0
        %v1110 = vadd.f32 0.0, %v1109
        %v1111 = vpop.f32.mrf.mxu0
        %1112 = vmatprep.mubr.f32.mxu0 0.0
        %1113 = vmatmul.mubr.f32.gmra.mxu0 %v1019
        %v1114 = vpop.f32.mrf.mxu0
        %v1115 = vadd.f32 0.0, %v1114
        %v1116 = vpop.f32.mrf.mxu0
        %1117 = vmatprep.mubr.f32.mxu0 0.0
        %1118 = vmatmul.mubr.f32.gmra.mxu0 %v1022
        %v1119 = vpop.f32.mrf.mxu0
        %v1120 = vadd.f32 0.0, %v1119
        %v1121 = vpop.f32.mrf.mxu0
        %1122 = vmatprep.mubr.f32.mxu0 0.0
        %1123 = vmatmul.mubr.f32.gmra.mxu0 %v1025
        %v1124 = vpop.f32.mrf.mxu0
        %v1125 = vadd.f32 0.0, %v1124
        %v1126 = vpop.f32.mrf.mxu0
        %1127 = vmatprep.mubr.f32.mxu0 0.0
        %1128 = vmatmul.mubr.f32.gmra.mxu0 %v1028
        %v1129 = vpop.f32.mrf.mxu0
        %v1130 = vadd.f32 0.0, %v1129
        %v1131 = vpop.f32.mrf.mxu0
        %1132 = vmatprep.mubr.f32.mxu0 0.0
        %1133 = vmatmul.mubr.f32.gmra.mxu0 %v1031
        %v1134 = vpop.f32.mrf.mxu0
        %v1135 = vadd.f32 0.0, %v1134
        %v1136 = vpop.f32.mrf.mxu0
        %1137 = vdwg.mxu0
        %v1138 = vmul.f32 %v1100, %v691
        %v1139 = vmul.f32 %v1105, %v692
        %v1140 = vmul.f32 %v1110, %v693
        %v1141 = vmul.f32 %v1115, %v694
        %v1142 = vmul.f32 %v1120, %v695
        %v1143 = vmul.f32 %v1125, %v696
        %v1144 = vmul.f32 %v1130, %v697
        %v1145 = vmul.f32 %v1135, %v698
        %v1146 = vsel %vm723, %v1138, 0.0
        %v1147 = vsel %vm723, %v1139, 0.0
        %v1148 = vadd.f32 %v1146, %v1147
        %v1149 = vsel %vm723, %v1140, 0.0
        %v1150 = vadd.f32 %v1148, %v1149
        %v1151 = vsel %vm723, %v1141, 0.0
        %v1152 = vadd.f32 %v1150, %v1151
        %v1153 = vsel %vm723, %v1142, 0.0
        %v1154 = vadd.f32 %v1152, %v1153
        %v1155 = vsel %vm723, %v1143, 0.0
        %v1156 = vadd.f32 %v1154, %v1155
        %v1157 = vsel %vm723, %v1144, 0.0
        %v1158 = vadd.f32 %v1156, %v1157
        %v1159 = vsel %vm723, %v1145, 0.0
        %v1160 = vadd.f32 %v1158, %v1159
        %s1161 = scalar_lea.vmem %s1, 1
        %v1162 = vld [vmem:[%s1161] sm:$0x1]
        %v1163 = vmul.f32 %v765, %v691
        %v1164 = vmul.f32 %v765, %v692
        %v1165 = vmul.f32 %v765, %v693
        %v1166 = vmul.f32 %v765, %v694
        %v1167 = vmul.f32 %v765, %v695
        %v1168 = vmul.f32 %v765, %v696
        %v1169 = vmul.f32 %v765, %v697
        %v1170 = vmul.f32 %v765, %v698
        %v1172 = vlaneseq
        %v1173 = vshrl.u32 %v1172, 7
        %v1174 = vsub.s32 0, %v1173
        %v1175 = vrot.slane %v1162, %v1174
        %1178 = vrot.lane.b32.xlu0 %v765, 96
        %v1179 = vpop.permute.xlu0 %1178
        %v1181 = vsel %vm723, %v1163, 0
        %v1184 = vsel %vm723, %v1164, 0
        %v1187 = vsel %vm723, %v1165, 0
        %v1190 = vsel %vm723, %v1166, 0
        %v1193 = vsel %vm723, %v1167, 0
        %v1196 = vsel %vm723, %v1168, 0
        %v1199 = vsel %vm723, %v1169, 0
        %v1202 = vsel %vm723, %v1170, 0
        %v1204 = vsel %vm723, %v1179, 0
        %1206 = vmatprep.subr.mxu0 0.0
        %1207 = vmatpush1.xpose.msra.mxu0 0.0
        %1208 = vmatprep.subr.mxu0 0.0
        %1209 = vmatpush1.xpose.msra.mxu0 0.0
        %1210 = vmatprep.subr.mxu0 0.0
        %1211 = vmatpush1.xpose.msra.mxu0 0.0
        %1212 = vmatprep.subr.mxu0 0.0
        %1213 = vmatpush1.xpose.msra.mxu0 0.0
        %1214 = vmatprep.subr.mxu0 0.0
        %1215 = vmatpush1.xpose.msra.mxu0 0.0
        %1216 = vmatprep.subr.mxu0 0.0
        %1217 = vmatpush1.xpose.msra.mxu0 0.0
        %1218 = vmatprep.subr.mxu0 0.0
        %1219 = vmatpush1.xpose.msra.mxu0 0.0
        %1220 = vmatprep.subr.mxu0 0.0
        %1221 = vmatpush1.xpose.msra.mxu0 0.0
        %1222 = vmatprep.subr.mxu0 0.0
        %1223 = vmatpush1.xpose.msra.mxu0 0.0
        %1224 = vmatprep.subr.mxu0 0.0
        %1225 = vmatpush1.xpose.msra.mxu0 0.0
        %1226 = vmatprep.subr.mxu0 0.0
        %1227 = vmatpush1.xpose.msra.mxu0 0.0
        %1228 = vmatprep.subr.mxu0 0.0
        %1229 = vmatpush1.xpose.msra.mxu0 0.0
        %1230 = vmatprep.subr.mxu0 0.0
        %1231 = vmatpush1.xpose.msra.mxu0 0.0
        %1232 = vmatprep.subr.mxu0 0.0
        %1233 = vmatpush1.xpose.msra.mxu0 0.0
        %1234 = vmatprep.subr.mxu0 0.0
        %1235 = vmatpush1.xpose.msra.mxu0 0.0
        %1236 = vmatprep.subr.mxu0 0.0
        %1237 = vmatpush1.xpose.msra.mxu0 %v1204
        %1238 = vmatprep.subr.mxu0 0.0
        %1239 = vmatpush2.xpose.msra.mxu0 0.0
        %1240 = vmatprep.subr.mxu0 0.0
        %1241 = vmatpush2.xpose.msra.mxu0 0.0
        %1242 = vmatprep.subr.mxu0 0.0
        %1243 = vmatpush2.xpose.msra.mxu0 0.0
        %1244 = vmatprep.subr.mxu0 0.0
        %1245 = vmatpush2.xpose.msra.mxu0 0.0
        %1246 = vmatprep.subr.mxu0 0.0
        %1247 = vmatpush2.xpose.msra.mxu0 0.0
        %1248 = vmatprep.subr.mxu0 0.0
        %1249 = vmatpush2.xpose.msra.mxu0 0.0
        %1250 = vmatprep.subr.mxu0 0.0
        %1251 = vmatpush2.xpose.msra.mxu0 0.0
        %1252 = vmatprep.subr.mxu0 0.0
        %1253 = vmatpush2.xpose.msra.mxu0 0.0
        %1254 = vmatprep.subr.mxu0 0.0
        %1255 = vmatpush2.xpose.msra.mxu0 0.0
        %1256 = vmatprep.subr.mxu0 0.0
        %1257 = vmatpush2.xpose.msra.mxu0 0.0
        %1258 = vmatprep.subr.mxu0 0.0
        %1259 = vmatpush2.xpose.msra.mxu0 0.0
        %1260 = vmatprep.subr.mxu0 0.0
        %1261 = vmatpush2.xpose.msra.mxu0 0.0
        %1262 = vmatprep.subr.mxu0 0.0
        %1263 = vmatpush2.xpose.msra.mxu0 0.0
        %1264 = vmatprep.subr.mxu0 0.0
        %1265 = vmatpush2.xpose.msra.mxu0 0.0
        %1266 = vmatprep.subr.mxu0 0.0
        %1267 = vmatpush2.xpose.msra.mxu0 0.0
        %1268 = vmatprep.subr.mxu0 0.0
        %1269 = vmatpush2.xpose.msra.mxu0 0.0
        %1270 = vmatprep.mubr.f32.mxu0 0.0
        %1271 = vmatmul.mubr.f32.gmra.mxu0 %v1181
        %v1272 = vpop.f32.mrf.mxu0
        %v1273 = vadd.f32 %v1175, %v1272
        %v1274 = vpop.f32.mrf.mxu0
        %1275 = vmatprep.mubr.f32.mxu0 0.0
        %1276 = vmatmul.mubr.f32.gmra.mxu0 %v1184
        %v1277 = vpop.f32.mrf.mxu0
        %v1278 = vadd.f32 %v1175, %v1277
        %v1279 = vpop.f32.mrf.mxu0
        %1280 = vmatprep.mubr.f32.mxu0 0.0
        %1281 = vmatmul.mubr.f32.gmra.mxu0 %v1187
        %v1282 = vpop.f32.mrf.mxu0
        %v1283 = vadd.f32 %v1175, %v1282
        %v1284 = vpop.f32.mrf.mxu0
        %1285 = vmatprep.mubr.f32.mxu0 0.0
        %1286 = vmatmul.mubr.f32.gmra.mxu0 %v1190
        %v1287 = vpop.f32.mrf.mxu0
        %v1288 = vadd.f32 %v1175, %v1287
        %v1289 = vpop.f32.mrf.mxu0
        %1290 = vmatprep.mubr.f32.mxu0 0.0
        %1291 = vmatmul.mubr.f32.gmra.mxu0 %v1193
        %v1292 = vpop.f32.mrf.mxu0
        %v1293 = vadd.f32 %v1175, %v1292
        %v1294 = vpop.f32.mrf.mxu0
        %1295 = vmatprep.mubr.f32.mxu0 0.0
        %1296 = vmatmul.mubr.f32.gmra.mxu0 %v1196
        %v1297 = vpop.f32.mrf.mxu0
        %v1298 = vadd.f32 %v1175, %v1297
        %v1299 = vpop.f32.mrf.mxu0
        %1300 = vmatprep.mubr.f32.mxu0 0.0
        %1301 = vmatmul.mubr.f32.gmra.mxu0 %v1199
        %v1302 = vpop.f32.mrf.mxu0
        %v1303 = vadd.f32 %v1175, %v1302
        %v1304 = vpop.f32.mrf.mxu0
        %1305 = vmatprep.mubr.f32.mxu0 0.0
        %1306 = vmatmul.mubr.f32.gmra.mxu0 %v1202
        %v1307 = vpop.f32.mrf.mxu0
        %v1308 = vadd.f32 %v1175, %v1307
        %v1309 = vpop.f32.mrf.mxu0
        %1310 = vdwg.mxu0
        %v1311 = vsel %vm917, %v1273, -inf
        %1312 = vmax.xlane.f32.xlu0 %v1311
        %v1313 = vpop.xlane.xlu0 %1312
        %v1314 = vsel %vm917, %v1278, -inf
        %1315 = vmax.xlane.f32.xlu0 %v1314
        %v1316 = vpop.xlane.xlu0 %1315
        %v1317 = vsel %vm917, %v1283, -inf
        %1318 = vmax.xlane.f32.xlu0 %v1317
        %v1319 = vpop.xlane.xlu0 %1318
        %v1320 = vsel %vm917, %v1288, -inf
        %1321 = vmax.xlane.f32.xlu0 %v1320
        %v1322 = vpop.xlane.xlu0 %1321
        %v1323 = vsel %vm917, %v1293, -inf
        %1324 = vmax.xlane.f32.xlu0 %v1323
        %v1325 = vpop.xlane.xlu0 %1324
        %v1326 = vsel %vm917, %v1298, -inf
        %1327 = vmax.xlane.f32.xlu0 %v1326
        %v1328 = vpop.xlane.xlu0 %1327
        %v1329 = vsel %vm917, %v1303, -inf
        %1330 = vmax.xlane.f32.xlu0 %v1329
        %v1331 = vpop.xlane.xlu0 %1330
        %v1332 = vsel %vm917, %v1308, -inf
        %1333 = vmax.xlane.f32.xlu0 %v1332
        %v1334 = vpop.xlane.xlu0 %1333
        %v1335 = vsub.f32 %v1273, %v1313
        %v1336 = vsub.f32 %v1278, %v1316
        %v1337 = vsub.f32 %v1283, %v1319
        %v1338 = vsub.f32 %v1288, %v1322
        %v1339 = vsub.f32 %v1293, %v1325
        %v1340 = vsub.f32 %v1298, %v1328
        %v1341 = vsub.f32 %v1303, %v1331
        %v1342 = vsub.f32 %v1308, %v1334
        %v1343 = vmul.f32 %v1335, 1.442695
        %v1344 = vpow.pop %v1343
        %v1345 = vmul.f32 %v1336, 1.442695
        %v1346 = vpow.pop %v1345
        %v1347 = vmul.f32 %v1337, 1.442695
        %v1348 = vpow.pop %v1347
        %v1349 = vmul.f32 %v1338, 1.442695
        %v1350 = vpow.pop %v1349
        %v1351 = vmul.f32 %v1339, 1.442695
        %v1352 = vpow.pop %v1351
        %v1353 = vmul.f32 %v1340, 1.442695
        %v1354 = vpow.pop %v1353
        %v1355 = vmul.f32 %v1341, 1.442695
        %v1356 = vpow.pop %v1355
        %v1357 = vmul.f32 %v1342, 1.442695
        %v1358 = vpow.pop %v1357
        %v1359 = vsel %vm917, %v1344, 0.0
        %1360 = vadd.xlane.f32.xlu0 %v1359
        %v1361 = vpop.xlane.xlu0 %1360
        %v1362 = vsel %vm917, %v1346, 0.0
        %1363 = vadd.xlane.f32.xlu0 %v1362
        %v1364 = vpop.xlane.xlu0 %1363
        %v1365 = vsel %vm917, %v1348, 0.0
        %1366 = vadd.xlane.f32.xlu0 %v1365
        %v1367 = vpop.xlane.xlu0 %1366
        %v1368 = vsel %vm917, %v1350, 0.0
        %1369 = vadd.xlane.f32.xlu0 %v1368
        %v1370 = vpop.xlane.xlu0 %1369
        %v1371 = vsel %vm917, %v1352, 0.0
        %1372 = vadd.xlane.f32.xlu0 %v1371
        %v1373 = vpop.xlane.xlu0 %1372
        %v1374 = vsel %vm917, %v1354, 0.0
        %1375 = vadd.xlane.f32.xlu0 %v1374
        %v1376 = vpop.xlane.xlu0 %1375
        %v1377 = vsel %vm917, %v1356, 0.0
        %1378 = vadd.xlane.f32.xlu0 %v1377
        %v1379 = vpop.xlane.xlu0 %1378
        %v1380 = vsel %vm917, %v1358, 0.0
        %1381 = vadd.xlane.f32.xlu0 %v1380
        %v1382 = vpop.xlane.xlu0 %1381
        %v1383 = vrcp.pop %v1361
        %v1384 = vrcp.pop %v1364
        %v1385 = vrcp.pop %v1367
        %v1386 = vrcp.pop %v1370
        %v1387 = vrcp.pop %v1373
        %v1388 = vrcp.pop %v1376
        %v1389 = vrcp.pop %v1379
        %v1390 = vrcp.pop %v1382
        %v1391 = vmul.f32 %v1344, %v1383
        %v1392 = vmul.f32 %v1346, %v1384
        %v1393 = vmul.f32 %v1348, %v1385
        %v1394 = vmul.f32 %v1350, %v1386
        %v1395 = vmul.f32 %v1352, %v1387
        %v1396 = vmul.f32 %v1354, %v1388
        %v1397 = vmul.f32 %v1356, %v1389
        %v1398 = vmul.f32 %v1358, %v1390
        %1399 = vrot.lane.b32.xlu0 %v765, 64
        %v1400 = vpop.permute.xlu0 %1399
        %v1403 = vsel %vm917, %v1391, 0
        %v1406 = vsel %vm917, %v1392, 0
        %v1409 = vsel %vm917, %v1393, 0
        %v1412 = vsel %vm917, %v1394, 0
        %v1415 = vsel %vm917, %v1395, 0
        %v1418 = vsel %vm917, %v1396, 0
        %v1421 = vsel %vm917, %v1397, 0
        %v1424 = vsel %vm917, %v1398, 0
        %1426 = vmatprep.subr.mxu0 0.0
        %1427 = vmatpush1.msra.mxu0 0.0
        %1428 = vmatprep.subr.mxu0 0.0
        %1429 = vmatpush1.msra.mxu0 0.0
        %1430 = vmatprep.subr.mxu0 0.0
        %1431 = vmatpush1.msra.mxu0 0.0
        %1432 = vmatprep.subr.mxu0 0.0
        %1433 = vmatpush1.msra.mxu0 0.0
        %1434 = vmatprep.subr.mxu0 0.0
        %1435 = vmatpush1.msra.mxu0 0.0
        %1436 = vmatprep.subr.mxu0 0.0
        %1437 = vmatpush1.msra.mxu0 0.0
        %1438 = vmatprep.subr.mxu0 0.0
        %1439 = vmatpush1.msra.mxu0 0.0
        %1440 = vmatprep.subr.mxu0 0.0
        %1441 = vmatpush1.msra.mxu0 0.0
        %1442 = vmatprep.subr.mxu0 0.0
        %1443 = vmatpush1.msra.mxu0 0.0
        %1444 = vmatprep.subr.mxu0 0.0
        %1445 = vmatpush1.msra.mxu0 0.0
        %1446 = vmatprep.subr.mxu0 0.0
        %1447 = vmatpush1.msra.mxu0 0.0
        %1448 = vmatprep.subr.mxu0 0.0
        %1449 = vmatpush1.msra.mxu0 0.0
        %1450 = vmatprep.subr.mxu0 0.0
        %1451 = vmatpush1.msra.mxu0 0.0
        %1452 = vmatprep.subr.mxu0 0.0
        %1453 = vmatpush1.msra.mxu0 0.0
        %1454 = vmatprep.subr.mxu0 0.0
        %1455 = vmatpush1.msra.mxu0 0.0
        %1456 = vmatprep.subr.mxu0 0.0
        %1457 = vmatpush1.msra.mxu0 %v1400
        %1458 = vmatprep.subr.mxu0 0.0
        %1459 = vmatpush2.msra.mxu0 0.0
        %1460 = vmatprep.subr.mxu0 0.0
        %1461 = vmatpush2.msra.mxu0 0.0
        %1462 = vmatprep.subr.mxu0 0.0
        %1463 = vmatpush2.msra.mxu0 0.0
        %1464 = vmatprep.subr.mxu0 0.0
        %1465 = vmatpush2.msra.mxu0 0.0
        %1466 = vmatprep.subr.mxu0 0.0
        %1467 = vmatpush2.msra.mxu0 0.0
        %1468 = vmatprep.subr.mxu0 0.0
        %1469 = vmatpush2.msra.mxu0 0.0
        %1470 = vmatprep.subr.mxu0 0.0
        %1471 = vmatpush2.msra.mxu0 0.0
        %1472 = vmatprep.subr.mxu0 0.0
        %1473 = vmatpush2.msra.mxu0 0.0
        %1474 = vmatprep.subr.mxu0 0.0
        %1475 = vmatpush2.msra.mxu0 0.0
        %1476 = vmatprep.subr.mxu0 0.0
        %1477 = vmatpush2.msra.mxu0 0.0
        %1478 = vmatprep.subr.mxu0 0.0
        %1479 = vmatpush2.msra.mxu0 0.0
        %1480 = vmatprep.subr.mxu0 0.0
        %1481 = vmatpush2.msra.mxu0 0.0
        %1482 = vmatprep.subr.mxu0 0.0
        %1483 = vmatpush2.msra.mxu0 0.0
        %1484 = vmatprep.subr.mxu0 0.0
        %1485 = vmatpush2.msra.mxu0 0.0
        %1486 = vmatprep.subr.mxu0 0.0
        %1487 = vmatpush2.msra.mxu0 0.0
        %1488 = vmatprep.subr.mxu0 0.0
        %1489 = vmatpush2.msra.mxu0 0.0
        %1490 = vmatprep.mubr.f32.mxu0 0.0
        %1491 = vmatmul.mubr.f32.gmra.mxu0 %v1403
        %v1492 = vpop.f32.mrf.mxu0
        %v1493 = vadd.f32 0.0, %v1492
        %v1494 = vpop.f32.mrf.mxu0
        %1495 = vmatprep.mubr.f32.mxu0 0.0
        %1496 = vmatmul.mubr.f32.gmra.mxu0 %v1406
        %v1497 = vpop.f32.mrf.mxu0
        %v1498 = vadd.f32 0.0, %v1497
        %v1499 = vpop.f32.mrf.mxu0
        %1500 = vmatprep.mubr.f32.mxu0 0.0
        %1501 = vmatmul.mubr.f32.gmra.mxu0 %v1409
        %v1502 = vpop.f32.mrf.mxu0
        %v1503 = vadd.f32 0.0, %v1502
        %v1504 = vpop.f32.mrf.mxu0
        %1505 = vmatprep.mubr.f32.mxu0 0.0
        %1506 = vmatmul.mubr.f32.gmra.mxu0 %v1412
        %v1507 = vpop.f32.mrf.mxu0
        %v1508 = vadd.f32 0.0, %v1507
        %v1509 = vpop.f32.mrf.mxu0
        %1510 = vmatprep.mubr.f32.mxu0 0.0
        %1511 = vmatmul.mubr.f32.gmra.mxu0 %v1415
        %v1512 = vpop.f32.mrf.mxu0
        %v1513 = vadd.f32 0.0, %v1512
        %v1514 = vpop.f32.mrf.mxu0
        %1515 = vmatprep.mubr.f32.mxu0 0.0
        %1516 = vmatmul.mubr.f32.gmra.mxu0 %v1418
        %v1517 = vpop.f32.mrf.mxu0
        %v1518 = vadd.f32 0.0, %v1517
        %v1519 = vpop.f32.mrf.mxu0
        %1520 = vmatprep.mubr.f32.mxu0 0.0
        %1521 = vmatmul.mubr.f32.gmra.mxu0 %v1421
        %v1522 = vpop.f32.mrf.mxu0
        %v1523 = vadd.f32 0.0, %v1522
        %v1524 = vpop.f32.mrf.mxu0
        %1525 = vmatprep.mubr.f32.mxu0 0.0
        %1526 = vmatmul.mubr.f32.gmra.mxu0 %v1424
        %v1527 = vpop.f32.mrf.mxu0
        %v1528 = vadd.f32 0.0, %v1527
        %v1529 = vpop.f32.mrf.mxu0
        %1530 = vdwg.mxu0
        %v1531 = vmul.f32 %v1493, %v691
        %v1532 = vmul.f32 %v1498, %v692
        %v1533 = vmul.f32 %v1503, %v693
        %v1534 = vmul.f32 %v1508, %v694
        %v1535 = vmul.f32 %v1513, %v695
        %v1536 = vmul.f32 %v1518, %v696
        %v1537 = vmul.f32 %v1523, %v697
        %v1538 = vmul.f32 %v1528, %v698
        %v1539 = vsel %vm723, %v1531, 0.0
        %v1540 = vsel %vm723, %v1532, 0.0
        %v1541 = vadd.f32 %v1539, %v1540
        %v1542 = vsel %vm723, %v1533, 0.0
        %v1543 = vadd.f32 %v1541, %v1542
        %v1544 = vsel %vm723, %v1534, 0.0
        %v1545 = vadd.f32 %v1543, %v1544
        %v1546 = vsel %vm723, %v1535, 0.0
        %v1547 = vadd.f32 %v1545, %v1546
        %v1548 = vsel %vm723, %v1536, 0.0
        %v1549 = vadd.f32 %v1547, %v1548
        %v1550 = vsel %vm723, %v1537, 0.0
        %v1551 = vadd.f32 %v1549, %v1550
        %v1552 = vsel %vm723, %v1538, 0.0
        %v1553 = vadd.f32 %v1551, %v1552
        %p1554 = scmp.eq.s32.totalorder %s30, 1
        // Predicated region
        $region85: #{tpu_custom_call.1} parent=79 // pred_check
          %p1555 = pneg %p1554
        $region86: #{tpu_custom_call.1} parent=79 // pred_check_branch
          %1557 = sbr.rel (%p1555) target = $region88
        $region87: #{tpu_custom_call.1} parent=79 // pred_region
          %1558 = vst.msk [vmem:[#allocation4] sm:$0xff] %vm917, %v998
          %1559 = vst.msk [vmem:[#allocation4 + $0x8] sm:$0xff] %vm917, %v999
          %1560 = vst.msk [vmem:[#allocation4 + $0x10] sm:$0xff] %vm917, %v1000
          %1561 = vst.msk [vmem:[#allocation4 + $0x18] sm:$0xff] %vm917, %v1001
          %1562 = vst.msk [vmem:[#allocation4 + $0x20] sm:$0xff] %vm917, %v1002
          %1563 = vst.msk [vmem:[#allocation4 + $0x28] sm:$0xff] %vm917, %v1003
          %1564 = vst.msk [vmem:[#allocation4 + $0x30] sm:$0xff] %vm917, %v1004
          %1565 = vst.msk [vmem:[#allocation4 + $0x38] sm:$0xff] %vm917, %v1005
          %1566 = vst.msk [vmem:[#allocation4 + $0x40] sm:$0xff] %vm917, %v1391
          %1567 = vst.msk [vmem:[#allocation4 + $0x48] sm:$0xff] %vm917, %v1392
          %1568 = vst.msk [vmem:[#allocation4 + $0x50] sm:$0xff] %vm917, %v1393
          %1569 = vst.msk [vmem:[#allocation4 + $0x58] sm:$0xff] %vm917, %v1394
          %1570 = vst.msk [vmem:[#allocation4 + $0x60] sm:$0xff] %vm917, %v1395
          %1571 = vst.msk [vmem:[#allocation4 + $0x68] sm:$0xff] %vm917, %v1396
          %1572 = vst.msk [vmem:[#allocation4 + $0x70] sm:$0xff] %vm917, %v1397
          %1573 = vst.msk [vmem:[#allocation4 + $0x78] sm:$0xff] %vm917, %v1398
        $region88: #{tpu_custom_call.1} parent=79 // pred_fallthru
          _
        %v1574 = vpack.c.bf16 %v1553, %v1160
        %v1575 = vld [vmem:[%s647] sm:$0xf]
        %v1576 = vld [vmem:[%s647 + $0x4] sm:$0xf]
        %v1577 = vld [vmem:[%s647 + $0x8] sm:$0xf]
        %v1578 = vld [vmem:[%s647 + $0xc] sm:$0xf]
        %v1579 = vld [vmem:[%s650] sm:$0x1]
        %v1581 = vlaneseq
        %v1582 = vshrl.u32 %v1581, 7
        %v1583 = vsub.s32 0, %v1582
        %v1584 = vrot.slane %v1579, %v1583
        %v1590 = vunpack.c.l.b16 %v1575
        %v1591 = vunpack.c.l.b16 %v1576
        %v1592 = vunpack.c.l.b16 %v1577
        %v1593 = vunpack.c.l.b16 %v1578
        %v1594 = vpack.c.b16 %v1591, %v1590
        %v1595 = vpack.c.b16 %v1593, %v1592
        %v1599 = vsel %vm723, %v1574, 0
        %1601 = vmatprep.subr.bf16.mxu0 0
        %1602 = vmatpush1.bf16.msra.mxu0 0
        %1603 = vmatprep.subr.bf16.mxu0 0
        %1604 = vmatpush1.bf16.msra.mxu0 0
        %1605 = vmatprep.subr.bf16.mxu0 0
        %1606 = vmatpush1.bf16.msra.mxu0 0
        %1607 = vmatprep.subr.bf16.mxu0 0
        %1608 = vmatpush1.bf16.msra.mxu0 0
        %1609 = vmatprep.subr.bf16.mxu0 0
        %1610 = vmatpush1.bf16.msra.mxu0 0
        %1611 = vmatprep.subr.bf16.mxu0 0
        %1612 = vmatpush1.bf16.msra.mxu0 0
        %1613 = vmatprep.subr.bf16.mxu0 0
        %1614 = vmatpush1.bf16.msra.mxu0 %v1595
        %1615 = vmatprep.subr.bf16.mxu0 0
        %1616 = vmatpush1.bf16.msra.mxu0 %v1594
        %1617 = vmatprep.subr.bf16.mxu0 0
        %1618 = vmatpush2.bf16.msra.mxu0 0
        %1619 = vmatprep.subr.bf16.mxu0 0
        %1620 = vmatpush2.bf16.msra.mxu0 0
        %1621 = vmatprep.subr.bf16.mxu0 0
        %1622 = vmatpush2.bf16.msra.mxu0 0
        %1623 = vmatprep.subr.bf16.mxu0 0
        %1624 = vmatpush2.bf16.msra.mxu0 0
        %1625 = vmatprep.subr.bf16.mxu0 0
        %1626 = vmatpush2.bf16.msra.mxu0 0
        %1627 = vmatprep.subr.bf16.mxu0 0
        %1628 = vmatpush2.bf16.msra.mxu0 0
        %1629 = vmatprep.subr.bf16.mxu0 0
        %1630 = vmatpush2.bf16.msra.mxu0 0
        %1631 = vmatprep.subr.bf16.mxu0 0
        %1632 = vmatpush2.bf16.msra.mxu0 0
        %1633 = vmatprep.mubr.bf16.mxu0 0
        %1634 = vmatmul.mubr.bf16.gmra.mxu0 %v1599
        %v1635 = vpop.f32.mrf.mxu0
        %v1636 = vadd.f32 %v1584, %v1635
        %v1637 = vpop.f32.mrf.mxu0
        %v1638 = vpop.f32.mrf.mxu0
        %v1639 = vadd.f32 %v1584, %v1638
        %v1640 = vpop.f32.mrf.mxu0
        %1641 = vdwg.mxu0
        %v1642 = vadd.f32 %v689, %v1636
        %v1643 = vadd.f32 %v690, %v1639
        %v1644 = vld [vmem:[%s653] sm:$0x1]
        %v1645 = vld [vmem:[%s656] sm:$0x1]
        %v1646 = vsel %vm723, %v1642, 0.0
        %1647 = vadd.xlane.f32.xlu0 %v1646
        %v1648 = vpop.xlane.xlu0 %1647
        %v1649 = vsel %vm723, %v1643, 0.0
        %1650 = vadd.xlane.f32.xlu0 %v1649
        %v1651 = vpop.xlane.xlu0 %1650
        %v1652 = vrcp.pop 32.0
        %v1653 = vmul.f32 %v1648, %v1652
        %v1654 = vmul.f32 %v1651, %v1652
        %v1655 = vmul.f32 %v1642, %v1642
        %v1656 = vmul.f32 %v1643, %v1643
        %v1657 = vsel %vm723, %v1655, 0.0
        %1658 = vadd.xlane.f32.xlu0 %v1657
        %v1659 = vpop.xlane.xlu0 %1658
        %v1660 = vsel %vm723, %v1656, 0.0
        %1661 = vadd.xlane.f32.xlu0 %v1660
        %v1662 = vpop.xlane.xlu0 %1661
        %v1663 = vmul.f32 %v1659, %v1652
        %v1664 = vmul.f32 %v1662, %v1652
        %v1665 = vsub.f32 %v1642, %v1653
        %v1666 = vsub.f32 %v1643, %v1654
        %v1667 = vmul.f32 %v1653, %v1653
        %v1668 = vmul.f32 %v1654, %v1654
        %v1669 = vsub.f32 %v1663, %v1667
        %v1670 = vsub.f32 %v1664, %v1668
        %v1671 = vadd.f32 %v1669, 1e-06
        %v1672 = vadd.f32 %v1670, 1e-06
        %v1673 = vrsqrt.pop %v1671
        %v1674 = vrsqrt.pop %v1672
        %v1675 = vmul.f32 %v1665, %v1673
        %v1676 = vmul.f32 %v1666, %v1674
        %v1678 = vlaneseq
        %v1679 = vshrl.u32 %v1678, 7
        %v1680 = vsub.s32 0, %v1679
        %v1681 = vrot.slane %v1644, %v1680
        %v1683 = vmul.f32 %v1675, %v1681
        %v1684 = vmul.f32 %v1676, %v1681
        %v1686 = vlaneseq
        %v1687 = vshrl.u32 %v1686, 7
        %v1688 = vsub.s32 0, %v1687
        %v1689 = vrot.slane %v1645, %v1688
        %v1691 = vadd.f32 %v1683, %v1689
        %v1692 = vadd.f32 %v1684, %v1689
        %v1693 = vpack.c.bf16 %v1692, %v1691
        %v1694 = vld [vmem:[%s661] sm:$0xf]
        %v1695 = vld [vmem:[%s661 + $0x4] sm:$0xf]
        %v1696 = vld [vmem:[%s661 + $0x8] sm:$0xf]
        %v1697 = vld [vmem:[%s661 + $0xc] sm:$0xf]
        %v1698 = vld [vmem:[%s664] sm:$0x1]
        %v1700 = vlaneseq
        %v1701 = vshrl.u32 %v1700, 7
        %v1702 = vsub.s32 0, %v1701
        %v1703 = vrot.slane %v1698, %v1702
        %v1709 = vunpack.c.l.b16 %v1694
        %v1710 = vunpack.c.l.b16 %v1695
        %v1711 = vunpack.c.l.b16 %v1696
        %v1712 = vunpack.c.l.b16 %v1697
        %v1713 = vpack.c.b16 %v1710, %v1709
        %v1714 = vpack.c.b16 %v1712, %v1711
        %v1718 = vsel %vm723, %v1693, 0
        %1720 = vmatprep.subr.bf16.mxu0 0
        %1721 = vmatpush1.bf16.msra.mxu0 0
        %1722 = vmatprep.subr.bf16.mxu0 0
        %1723 = vmatpush1.bf16.msra.mxu0 0
        %1724 = vmatprep.subr.bf16.mxu0 0
        %1725 = vmatpush1.bf16.msra.mxu0 0
        %1726 = vmatprep.subr.bf16.mxu0 0
        %1727 = vmatpush1.bf16.msra.mxu0 0
        %1728 = vmatprep.subr.bf16.mxu0 0
        %1729 = vmatpush1.bf16.msra.mxu0 0
        %1730 = vmatprep.subr.bf16.mxu0 0
        %1731 = vmatpush1.bf16.msra.mxu0 0
        %1732 = vmatprep.subr.bf16.mxu0 0
        %1733 = vmatpush1.bf16.msra.mxu0 %v1714
        %1734 = vmatprep.subr.bf16.mxu0 0
        %1735 = vmatpush1.bf16.msra.mxu0 %v1713
        %1736 = vmatprep.subr.bf16.mxu0 0
        %1737 = vmatpush2.bf16.msra.mxu0 0
        %1738 = vmatprep.subr.bf16.mxu0 0
        %1739 = vmatpush2.bf16.msra.mxu0 0
        %1740 = vmatprep.subr.bf16.mxu0 0
        %1741 = vmatpush2.bf16.msra.mxu0 0
        %1742 = vmatprep.subr.bf16.mxu0 0
        %1743 = vmatpush2.bf16.msra.mxu0 0
        %1744 = vmatprep.subr.bf16.mxu0 0
        %1745 = vmatpush2.bf16.msra.mxu0 0
        %1746 = vmatprep.subr.bf16.mxu0 0
        %1747 = vmatpush2.bf16.msra.mxu0 0
        %1748 = vmatprep.subr.bf16.mxu0 0
        %1749 = vmatpush2.bf16.msra.mxu0 0
        %1750 = vmatprep.subr.bf16.mxu0 0
        %1751 = vmatpush2.bf16.msra.mxu0 0
        %1752 = vmatprep.mubr.bf16.mxu0 0
        %1753 = vmatmul.mubr.bf16.gmra.mxu0 %v1718
        %v1754 = vpop.f32.mrf.mxu0
        %v1755 = vadd.f32 %v1703, %v1754
        %v1756 = vpop.f32.mrf.mxu0
        %v1757 = vpop.f32.mrf.mxu0
        %v1758 = vadd.f32 %v1703, %v1757
        %v1759 = vpop.f32.mrf.mxu0
        %1760 = vdwg.mxu0
        %v1761 = vmul.f32 %v1755, 0.5
        %v1762 = vmul.f32 %v1758, 0.5
        %v1763 = vmul.f32 %v1755, %v1755
        %v1764 = vmul.f32 %v1758, %v1758
        %v1765 = vmul.f32 %v1763, %v1755
        %v1766 = vmul.f32 %v1764, %v1758
        %v1767 = vmul.f32 %v1765, 0.044715
        %v1768 = vmul.f32 %v1766, 0.044715
        %v1769 = vadd.f32 %v1755, %v1767
        %v1770 = vadd.f32 %v1758, %v1768
        %v1771 = vmul.f32 %v1769, 0.7978846
        %v1772 = vmul.f32 %v1770, 0.7978846
        %v1773 = vtanh.pop %v1771
        %v1774 = vtanh.pop %v1772
        %v1775 = vadd.f32 %v1773, 1.0
        %v1776 = vadd.f32 %v1774, 1.0
        %v1777 = vmul.f32 %v1761, %v1775
        %v1778 = vmul.f32 %v1762, %v1776
        %v1779 = vpack.c.bf16 %v1778, %v1777
        %v1780 = vld [vmem:[%s669] sm:$0xf]
        %v1781 = vld [vmem:[%s669 + $0x4] sm:$0xf]
        %v1782 = vld [vmem:[%s669 + $0x8] sm:$0xf]
        %v1783 = vld [vmem:[%s669 + $0xc] sm:$0xf]
        %v1784 = vld [vmem:[%s669 + $0x10] sm:$0xf]
        %v1785 = vld [vmem:[%s669 + $0x14] sm:$0xf]
        %v1786 = vld [vmem:[%s669 + $0x18] sm:$0xf]
        %v1787 = vld [vmem:[%s669 + $0x1c] sm:$0xf]
        %v1788 = vld [vmem:[%s669 + $0x20] sm:$0xf]
        %v1789 = vld [vmem:[%s669 + $0x24] sm:$0xf]
        %v1790 = vld [vmem:[%s669 + $0x28] sm:$0xf]
        %v1791 = vld [vmem:[%s669 + $0x2c] sm:$0xf]
        %v1792 = vld [vmem:[%s669 + $0x30] sm:$0xf]
        %v1793 = vld [vmem:[%s669 + $0x34] sm:$0xf]
        %v1794 = vld [vmem:[%s669 + $0x38] sm:$0xf]
        %v1795 = vld [vmem:[%s669 + $0x3c] sm:$0xf]
        %v1796 = vld [vmem:[%s672] sm:$0x1]
        %v1798 = vlaneseq
        %v1799 = vshrl.u32 %v1798, 7
        %v1800 = vsub.s32 0, %v1799
        %v1801 = vrot.slane %v1796, %v1800
        %v1819 = vunpack.c.l.b16 %v1780
        %v1820 = vunpack.c.l.b16 %v1781
        %v1821 = vunpack.c.l.b16 %v1782
        %v1822 = vunpack.c.l.b16 %v1783
        %v1823 = vunpack.c.l.b16 %v1784
        %v1824 = vunpack.c.l.b16 %v1785
        %v1825 = vunpack.c.l.b16 %v1786
        %v1826 = vunpack.c.l.b16 %v1787
        %v1827 = vunpack.c.l.b16 %v1788
        %v1828 = vunpack.c.l.b16 %v1789
        %v1829 = vunpack.c.l.b16 %v1790
        %v1830 = vunpack.c.l.b16 %v1791
        %v1831 = vunpack.c.l.b16 %v1792
        %v1832 = vunpack.c.l.b16 %v1793
        %v1833 = vunpack.c.l.b16 %v1794
        %v1834 = vunpack.c.l.b16 %v1795
        %v1835 = vpack.c.b16 %v1820, %v1819
        %v1836 = vpack.c.b16 %v1822, %v1821
        %v1837 = vpack.c.b16 %v1824, %v1823
        %v1838 = vpack.c.b16 %v1826, %v1825
        %v1839 = vpack.c.b16 %v1828, %v1827
        %v1840 = vpack.c.b16 %v1830, %v1829
        %v1841 = vpack.c.b16 %v1832, %v1831
        %v1842 = vpack.c.b16 %v1834, %v1833
        %1851 = vmatprep.subr.bf16.mxu0 0
        %1852 = vmatpush1.bf16.msra.mxu0 %v1842
        %1853 = vmatprep.subr.bf16.mxu0 0
        %1854 = vmatpush1.bf16.msra.mxu0 %v1841
        %1855 = vmatprep.subr.bf16.mxu0 0
        %1856 = vmatpush1.bf16.msra.mxu0 %v1840
        %1857 = vmatprep.subr.bf16.mxu0 0
        %1858 = vmatpush1.bf16.msra.mxu0 %v1839
        %1859 = vmatprep.subr.bf16.mxu0 0
        %1860 = vmatpush1.bf16.msra.mxu0 %v1838
        %1861 = vmatprep.subr.bf16.mxu0 0
        %1862 = vmatpush1.bf16.msra.mxu0 %v1837
        %1863 = vmatprep.subr.bf16.mxu0 0
        %1864 = vmatpush1.bf16.msra.mxu0 %v1836
        %1865 = vmatprep.subr.bf16.mxu0 0
        %1866 = vmatpush1.bf16.msra.mxu0 %v1835
        %1867 = vmatprep.subr.bf16.mxu0 0
        %1868 = vmatpush2.bf16.msra.mxu0 0
        %1869 = vmatprep.subr.bf16.mxu0 0
        %1870 = vmatpush2.bf16.msra.mxu0 0
        %1871 = vmatprep.subr.bf16.mxu0 0
        %1872 = vmatpush2.bf16.msra.mxu0 0
        %1873 = vmatprep.subr.bf16.mxu0 0
        %1874 = vmatpush2.bf16.msra.mxu0 0
        %1875 = vmatprep.subr.bf16.mxu0 0
        %1876 = vmatpush2.bf16.msra.mxu0 0
        %1877 = vmatprep.subr.bf16.mxu0 0
        %1878 = vmatpush2.bf16.msra.mxu0 0
        %1879 = vmatprep.subr.bf16.mxu0 0
        %1880 = vmatpush2.bf16.msra.mxu0 0
        %1881 = vmatprep.subr.bf16.mxu0 0
        %1882 = vmatpush2.bf16.msra.mxu0 0
        %1883 = vmatprep.mubr.bf16.mxu0 0
        %1884 = vmatmul.mubr.bf16.gmra.mxu0 %v1779
        %v1885 = vpop.f32.mrf.mxu0
        %v1886 = vadd.f32 %v1801, %v1885
        %v1887 = vpop.f32.mrf.mxu0
        %v1888 = vpop.f32.mrf.mxu0
        %v1889 = vadd.f32 %v1801, %v1888
        %v1890 = vpop.f32.mrf.mxu0
        %1891 = vdwg.mxu0
        %v1892 = vadd.f32 %v1691, %v1886
        %v1893 = vadd.f32 %v1692, %v1889
        %v1894 = vld [vmem:[%s675] sm:$0x1]
        %v1895 = vld [vmem:[%s678] sm:$0x1]
        %v1896 = vsel %vm723, %v1892, 0.0
        %1897 = vadd.xlane.f32.xlu0 %v1896
        %v1898 = vpop.xlane.xlu0 %1897
        %v1899 = vsel %vm723, %v1893, 0.0
        %1900 = vadd.xlane.f32.xlu0 %v1899
        %v1901 = vpop.xlane.xlu0 %1900
        %v1902 = vmul.f32 %v1898, %v1652
        %v1903 = vmul.f32 %v1901, %v1652
        %v1904 = vmul.f32 %v1892, %v1892
        %v1905 = vmul.f32 %v1893, %v1893
        %v1906 = vsel %vm723, %v1904, 0.0
        %1907 = vadd.xlane.f32.xlu0 %v1906
        %v1908 = vpop.xlane.xlu0 %1907
        %v1909 = vsel %vm723, %v1905, 0.0
        %1910 = vadd.xlane.f32.xlu0 %v1909
        %v1911 = vpop.xlane.xlu0 %1910
        %v1912 = vmul.f32 %v1908, %v1652
        %v1913 = vmul.f32 %v1911, %v1652
        %v1914 = vsub.f32 %v1892, %v1902
        %v1915 = vsub.f32 %v1893, %v1903
        %v1916 = vmul.f32 %v1902, %v1902
        %v1917 = vmul.f32 %v1903, %v1903
        %v1918 = vsub.f32 %v1912, %v1916
        %v1919 = vsub.f32 %v1913, %v1917
        %v1920 = vadd.f32 %v1918, 1e-06
        %v1921 = vadd.f32 %v1919, 1e-06
        %v1922 = vrsqrt.pop %v1920
        %v1923 = vrsqrt.pop %v1921
        %v1924 = vmul.f32 %v1914, %v1922
        %v1925 = vmul.f32 %v1915, %v1923
        %v1927 = vlaneseq
        %v1928 = vshrl.u32 %v1927, 7
        %v1929 = vsub.s32 0, %v1928
        %v1930 = vrot.slane %v1894, %v1929
        %v1932 = vmul.f32 %v1924, %v1930
        %v1933 = vmul.f32 %v1925, %v1930
        %v1935 = vlaneseq
        %v1936 = vshrl.u32 %v1935, 7
        %v1937 = vsub.s32 0, %v1936
        %v1938 = vrot.slane %v1895, %v1937
        %v1940 = vadd.f32 %v1932, %v1938
        %v1941 = vadd.f32 %v1933, %v1938
        %1942 = vst.msk [vmem:[#allocation2] sm:$0xff] %vm723, %v1940
        %1943 = vst.msk [vmem:[#allocation2 + $0x8] sm:$0xff] %vm723, %v1941
        // Predicated region
        $region89: #{tpu_custom_call.1} parent=79 // pred_check
          %p1944 = pneg %p418
        $region90: #{tpu_custom_call.1} parent=79 // pred_check_branch
          %1946 = sbr.rel (%p1944) target = $region92
        $region91: #{tpu_custom_call.1} parent=79 // pred_region
          %s1948 = ssub.s32 256, 256
          %1949 = vsyncadd [#allocation3], %s1948
          %s1950 = sshll.u32 [#allocation2], 4
          %s1951 = int_to_ptr.vmem [resolvable:$true] %s1950
          %1956 = dma.vmem_to_hbm [thread:$0]  %s1951, 256, %s15, [#allocation3], 128, 128, 8
        $region92: #{tpu_custom_call.1} parent=79 // pred_fallthru
          _
        // Predicated region
        $region93: #{tpu_custom_call.1} parent=79 // pred_check
          %p1957 = pneg %p439
        $region94: #{tpu_custom_call.1} parent=79 // pred_check_branch
          %1959 = sbr.rel (%p1957) target = $region96
        $region95: #{tpu_custom_call.1} parent=79 // pred_region
          %s1961 = ssub.s32 2048, 2048
          %1962 = vsyncadd [#allocation5], %s1961
          %s1963 = sshll.u32 [#allocation4], 4
          %s1964 = int_to_ptr.vmem [resolvable:$true] %s1963
          %1969 = dma.vmem_to_hbm [thread:$0]  %s1964, 2048, %s16, [#allocation5], 128, 128, 8
        $region96: #{tpu_custom_call.1} parent=79 // pred_fallthru
          _
        // Predicated region
        $region97: #{tpu_custom_call.1} parent=79 // pred_check
          %p1970 = pneg %p418
        $region98: #{tpu_custom_call.1} parent=79 // pred_check_branch
          %1972 = sbr.rel (%p1970) target = $region100
        $region99: #{tpu_custom_call.1} parent=79 // pred_region
          %1973 = dma.done [#allocation3], 256
        $region100: #{tpu_custom_call.1} parent=79 // pred_fallthru
          _
        // Predicated region
        $region101: #{tpu_custom_call.1} parent=79 // pred_check
          %p1974 = pneg %p439
        $region102: #{tpu_custom_call.1} parent=79 // pred_check_branch
          %1976 = sbr.rel (%p1974) target = $region104
        $region103: #{tpu_custom_call.1} parent=79 // pred_region
          %1977 = dma.done [#allocation5], 2048
        $region104: #{tpu_custom_call.1} parent=79 // pred_fallthru
          _
      $region80: #{tpu_custom_call.1} parent=5 // pred_fallthru
        _
      %p1978 = scmp.le.s32.totalorder 2, %s25
      // Predicated region
      $region105: #{tpu_custom_call.1} parent=5 // pred_check
        %p1979 = pneg %p1978
      $region106: #{tpu_custom_call.1} parent=5 // pred_check_branch
        %1981 = sbr.rel (%p1979) target = $region108
      $region107: #{tpu_custom_call.1} parent=5 // pred_region
        %s1982 = ssub.s32 %s25, 2
      $region108: #{tpu_custom_call.1} parent=5 // pred_fallthru
        _
    $region6: #{tpu_custom_call.1} parent=1 // loop_footer
      %s29 = sadd.s32 1, %s25
    $region7: #{tpu_custom_call.1} parent=1 // loop_footer_branch
      %24 = sbr.rel target = $region3
    $region8: #{tpu_custom_call.1} parent=1 // loop_exit
      _
    %1983 = vsyncpa [#allocation3], 1
    %s1984 = scalar_lea.sflag [#allocation3], 1
    %1985 = vsyncpa %s1984, 1
    %1986 = vsyncpa [#allocation5], 1

</llo_original>
